<compile_context>
chip_gen: v6e
topology: v6e:2x2x1
jax: 0.10.0
libtpu: 0.0.40
codegen_flags: <defaults>
</compile_context>

<pallas_src>
import functools

import jax
import jax.numpy as jnp
import numpy as np
from jax import lax
from jax.experimental import pallas as pl
from jax.experimental.pallas import tpu as pltpu


# --------------------------------------------------------------------------
# In-kernel GroupNorm over the channel axis of an (n, H) f32 activation.
# Group statistics via matmuls against a one-hot membership matrix (built once
# in the wrapper).  Two-pass centered variance (numerically stable), rsqrt
# computed at (n, G) granularity.  Matches torch.nn.GroupNorm (biased var,
# per-channel affine).
# --------------------------------------------------------------------------
def _group_norm(x, member, member_t, scale, bias, cpg, eps):
    # x: (n, H) f32   member: (H, G) f32   member_t: (G, H) f32
    mean = jnp.dot(x, member, preferred_element_type=jnp.float32) / cpg      # (n, G)
    mean_b = jnp.dot(mean, member_t, preferred_element_type=jnp.float32)     # (n, H)
    xc = x - mean_b
    var = jnp.dot(xc * xc, member, preferred_element_type=jnp.float32) / cpg  # (n, G)
    r = lax.rsqrt(var + eps)                                                  # (n, G)
    r_b = jnp.dot(r, member_t, preferred_element_type=jnp.float32)            # (n, H)
    return xc * r_b * scale + bias


# --------------------------------------------------------------------------
# Fused head kernel (one grid step = one (ROI-tile, level, K-tile) cell)
# --------------------------------------------------------------------------
def _head_kernel(*refs, num_levels, num_groups, eps):
    x_refs = refs[:num_levels]
    (member_ref, member_t_ref,
     w1_ref, b1_ref, g1s_ref, g1b_ref,
     w2_ref, b2_ref, g2s_ref, g2b_ref,
     out_ref, acc_ref, mx_ref) = refs[num_levels:]

    l = pl.program_id(1)
    k = pl.program_id(2)
    nk = pl.num_programs(2)

    # ---- FC1 partial-sum accumulation over the K (D_in) axis --------------
    @pl.when(k == 0)
    def _():
        acc_ref[...] = jnp.zeros_like(acc_ref)

    # Select the activation tile of the current level (other buffers hold a
    # frozen block; their loads are discarded by the select).
    x_tile = x_refs[0][...]
    for j in range(1, num_levels):
        x_tile = jnp.where(l == j, x_refs[j][...], x_tile)

    acc_ref[...] += jnp.dot(x_tile, w1_ref[0],
                            preferred_element_type=jnp.float32)

    # ---- level epilogue: bias + GN1 + ReLU, running max over levels -------
    @pl.when(k == nk - 1)
    def _():
        member = member_ref[...]
        member_t = member_t_ref[...]
        cpg = member.shape[0] // num_groups

        h = acc_ref[...] + b1_ref[0]
        h = _group_norm(h, member, member_t, g1s_ref[0], g1b_ref[0], cpg, eps)
        h = jnp.maximum(h, 0.0)

        @pl.when(l == 0)
        def _():
            mx_ref[...] = h

        @pl.when(l > 0)
        def _():
            mx_ref[...] = jnp.maximum(mx_ref[...], h)

        # ---- final epilogue: FC2 + GN2 + ReLU, store output ---------------
        @pl.when(l == num_levels - 1)
        def _():
            hm = mx_ref[...]
            h2 = jnp.dot(hm.astype(w2_ref.dtype), w2_ref[...],
                         preferred_element_type=jnp.float32) + b2_ref[...]
            h2 = _group_norm(h2, member, member_t,
                             g2s_ref[...], g2b_ref[...], cpg, eps)
            out_ref[...] = jnp.maximum(h2, 0.0).astype(out_ref.dtype)


# --------------------------------------------------------------------------
# Wrapper: builds grid / BlockSpecs, streams weights, bf16 compute dtype
# --------------------------------------------------------------------------
def roi_2mlp_head_gn_adp_forward(x_levels, params, *, num_groups, eps=1e-5,
                                 tn=8, tk=128, vmem_limit_bytes=None):
    """x_levels: list of (N, C, R, R) pooled ROI features (one per FPN level)."""
    num_levels = len(x_levels)
    n = x_levels[0].shape[0]
    d_in = int(np.prod(x_levels[0].shape[1:]))
    hidden = params["w2"].shape[1]

    assert hidden % num_groups == 0, "hidden_dim must be divisible by num_groups"
    tn = min(tn, n)
    tk = min(tk, d_in)
    assert n % tn == 0, f"num ROIs {n} must be divisible by tile {tn}"
    assert d_in % tk == 0, f"D_in {d_in} must be divisible by tile {tk}"

    compute_dtype = jnp.bfloat16
    # flatten NCHW exactly like PyTorch .view(batch, -1); reshape of
    # contiguous NCHW is free. No stacking, no f32 upcast.
    xs = [xl.reshape(n, d_in).astype(compute_dtype) for xl in x_levels]
    w1 = params["w1"].astype(compute_dtype)
    w2 = params["w2"].astype(compute_dtype)

    # one-hot group membership matrices (hoisted out of the kernel)
    cpg = hidden // num_groups
    member = (jnp.arange(hidden)[:, None] // cpg ==
              jnp.arange(num_groups)[None, :]).astype(jnp.float32)   # (H, G)
    member_t = jnp.transpose(member)                                 # (G, H)

    num_k = d_in // tk
    num_i = n // tn
    L = num_levels

    def x_map(j):
        # stream this level's k-tiles only while the grid is on level j;
        # freeze to block (i, 0) otherwise so it is not re-fetched each step.
        return lambda i, l, k: (i, jnp.where(l == j, k, jnp.zeros_like(k)))

    in_specs = (
        [pl.BlockSpec((tn, tk), x_map(j)) for j in range(L)] +
        [pl.BlockSpec((hidden, num_groups), lambda i, l, k: (0, 0)),   # member
         pl.BlockSpec((num_groups, hidden), lambda i, l, k: (0, 0)),   # member_t
         pl.BlockSpec((1, tk, hidden), lambda i, l, k: (l, k, 0)),     # w1
         pl.BlockSpec((1, 1, hidden), lambda i, l, k: (l, 0, 0)),      # b1
         pl.BlockSpec((1, 1, hidden), lambda i, l, k: (l, 0, 0)),      # gn1_s
         pl.BlockSpec((1, 1, hidden), lambda i, l, k: (l, 0, 0)),      # gn1_b
         pl.BlockSpec((hidden, hidden), lambda i, l, k: (0, 0)),       # w2
         pl.BlockSpec((1, hidden), lambda i, l, k: (0, 0)),            # b2
         pl.BlockSpec((1, hidden), lambda i, l, k: (0, 0)),            # gn2_s
         pl.BlockSpec((1, hidden), lambda i, l, k: (0, 0))])           # gn2_b

    kernel = functools.partial(_head_kernel, num_levels=L,
                               num_groups=num_groups, eps=eps)

    cp_kwargs = dict(dimension_semantics=("parallel", "arbitrary", "arbitrary"))
    if vmem_limit_bytes is not None:
        cp_kwargs["vmem_limit_bytes"] = int(vmem_limit_bytes)

    return pl.pallas_call(
        kernel,
        out_shape=jax.ShapeDtypeStruct((n, hidden), jnp.float32),
        grid_spec=pltpu.PrefetchScalarGridSpec(
            num_scalar_prefetch=0,
            grid=(num_i, L, num_k),
            in_specs=in_specs,
            out_specs=pl.BlockSpec((tn, hidden), lambda i, l, k: (i, 0)),
            scratch_shapes=[pltpu.VMEM((tn, hidden), jnp.float32),   # FC1 acc
                            pltpu.VMEM((tn, hidden), jnp.float32)],  # level max
        ),
        compiler_params=pltpu.CompilerParams(**cp_kwargs),
    )(*xs, member, member_t, w1,
      params["b1"], params["gn1_s"], params["gn1_b"],
      w2, params["b2"], params["gn2_s"], params["gn2_b"])


# --------------------------------------------------------------------------
# Pure-JAX reference (mirrors PyTorch semantics, f32) for verification
# --------------------------------------------------------------------------
def _ref_group_norm(x, scale, bias, num_groups, eps):
    n, h = x.shape
    xr = x.reshape(n, num_groups, h // num_groups)
    mean = xr.mean(axis=-1, keepdims=True)
    var = xr.var(axis=-1, keepdims=True)
    xhat = ((xr - mean) / jnp.sqrt(var + eps)).reshape(n, h)
    return xhat * scale + bias


def _ref_forward(x_levels, params, *, num_groups, eps=1e-5):
    n = x_levels[0].shape[0]
    hs = []
    for i, xl in enumerate(x_levels):
        xi = xl.reshape(n, -1).astype(jnp.float32)
        h = xi @ params["w1"][i] + params["b1"][i]
        h = _ref_group_norm(h, params["gn1_s"][i], params["gn1_b"][i],
                            num_groups, eps)
        hs.append(jnp.maximum(h, 0.0))
    acc = hs[0]
    for i in range(1, len(hs)):
        acc = jnp.maximum(acc, hs[i])
    h2 = acc @ params["w2"] + params["b2"]
    h2 = _ref_group_norm(h2, params["gn2_s"], params["gn2_b"], num_groups, eps)
    return jnp.maximum(h2, 0.0)


# --------------------------------------------------------------------------
# Deterministic parameter construction (Xavier-like linear init, GN affine)
# --------------------------------------------------------------------------
def make_params(key, num_levels, dim_in_flat, hidden_dim):
    keys = jax.random.split(key, 6)
    lim1 = float(np.sqrt(6.0 / (dim_in_flat + hidden_dim)))
    lim2 = float(np.sqrt(6.0 / (hidden_dim + hidden_dim)))
    w1 = jax.random.uniform(keys[0], (num_levels, dim_in_flat, hidden_dim),
                            jnp.float32, -lim1, lim1)
    b1 = jnp.zeros((num_levels, 1, hidden_dim), jnp.float32)  # init.constant_(bias, 0)
    gn1_s = 1.0 + 0.1 * jax.random.normal(keys[1], (num_levels, 1, hidden_dim), jnp.float32)
    gn1_b = 0.1 * jax.random.normal(keys[2], (num_levels, 1, hidden_dim), jnp.float32)
    w2 = jax.random.uniform(keys[3], (hidden_dim, hidden_dim), jnp.float32, -lim2, lim2)
    b2 = jnp.zeros((1, hidden_dim), jnp.float32)
    gn2_s = 1.0 + 0.1 * jax.random.normal(keys[4], (1, hidden_dim), jnp.float32)
    gn2_b = 0.1 * jax.random.normal(keys[5], (1, hidden_dim), jnp.float32)
    return dict(w1=w1, b1=b1, gn1_s=gn1_s, gn1_b=gn1_b,
                w2=w2, b2=b2, gn2_s=gn2_s, gn2_b=gn2_b)


if __name__ == "__main__":
    # Small synthetic config (mirrors cfg.FAST_RCNN / cfg.FPN structure) that
    # exercises tiling along both the ROI (i) and D_in (k) grid axes:
    num_levels = 4          # ROI_MAX_LEVEL - ROI_MIN_LEVEL + 1
    num_rois = 16           # "batch_size" of ROIs   -> 2 ROI tiles (tn=8)
    dim_in = 16             # FPN channel dim
    roi_size = 4            # ROI_XFORM_RESOLUTION   -> D_in = 256, 2 K tiles (tk=128)
    hidden_dim = 32         # MLP_HEAD_DIM
    num_groups = 4          # net_utils.get_group_gn(hidden_dim)
    eps = 1e-5              # GROUP_NORM.EPSILON

    dim_in_flat = dim_in * roi_size * roi_size

    key = jax.random.PRNGKey(0)
    kx, kp = jax.random.split(key)
    xkeys = jax.random.split(kx, num_levels)
    # per-level pooled ROI features, NCHW (roi_xform outputs)
    x_levels = [jax.random.normal(xkeys[i],
                                  (num_rois, dim_in, roi_size, roi_size),
                                  jnp.float32) for i in range(num_levels)]
    params = make_params(kp, num_levels, dim_in_flat, hidden_dim)

    out = roi_2mlp_head_gn_adp_forward(x_levels, params,
                                       num_groups=num_groups, eps=eps,
                                       tn=8, tk=128)
    out = jax.block_until_ready(out)

    ref = _ref_forward(x_levels, params, num_groups=num_groups, eps=eps)
    # bf16 matmul inputs (f32 accumulation) -> loosened tolerance vs f32 ref
    np.testing.assert_allclose(np.asarray(out), np.asarray(ref),
                               rtol=2e-2, atol=2e-2)
    assert out.shape == (num_rois, hidden_dim)
    print("KERNEL_OK")
</pallas_src>

<mosaic_0001>
module attributes {stable_mosaic.version = 11 : i64} {
  func.func @_head_kernel(%arg0: i32, %arg1: i32, %arg2: i32, %arg3: memref<8x128xbf16, #tpu.memory_space<vmem>>, %arg4: memref<8x128xbf16, #tpu.memory_space<vmem>>, %arg5: memref<8x128xbf16, #tpu.memory_space<vmem>>, %arg6: memref<8x128xbf16, #tpu.memory_space<vmem>>, %arg7: memref<32x4xf32, #tpu.memory_space<vmem>>, %arg8: memref<4x32xf32, #tpu.memory_space<vmem>>, %arg9: memref<1x128x32xbf16, #tpu.memory_space<vmem>>, %arg10: memref<1x1x32xf32, #tpu.memory_space<vmem>>, %arg11: memref<1x1x32xf32, #tpu.memory_space<vmem>>, %arg12: memref<1x1x32xf32, #tpu.memory_space<vmem>>, %arg13: memref<32x32xbf16, #tpu.memory_space<vmem>>, %arg14: memref<1x32xf32, #tpu.memory_space<vmem>>, %arg15: memref<1x32xf32, #tpu.memory_space<vmem>>, %arg16: memref<1x32xf32, #tpu.memory_space<vmem>>, %arg17: memref<8x32xf32, #tpu.memory_space<vmem>>, %arg18: memref<8x32xf32, #tpu.memory_space<vmem>>, %arg19: memref<8x32xf32, #tpu.memory_space<vmem>>) attributes {dimension_semantics = [#tpu.dimension_semantics<parallel>, #tpu.dimension_semantics<arbitrary>, #tpu.dimension_semantics<arbitrary>], iteration_bounds = array<i64: 2, 4, 2>, scalar_prefetch = 0 : i64, scratch_operands = 2 : i64, tpu.core_type = #tpu.core_type<tc>, window_params = [{transform_indices = @transform_0, window_bounds = array<i64: 8, 128>}, {transform_indices = @transform_1, window_bounds = array<i64: 8, 128>}, {transform_indices = @transform_2, window_bounds = array<i64: 8, 128>}, {transform_indices = @transform_3, window_bounds = array<i64: 8, 128>}, {pipeline_mode = #tpu.pipeline_mode<synchronous>, transform_indices = @transform_4, window_bounds = array<i64: 32, 4>}, {pipeline_mode = #tpu.pipeline_mode<synchronous>, transform_indices = @transform_5, window_bounds = array<i64: 4, 32>}, {transform_indices = @transform_6, window_bounds = array<i64: 1, 128, 32>}, {transform_indices = @transform_7, window_bounds = array<i64: 1, 1, 32>}, {transform_indices = @transform_8, window_bounds = array<i64: 1, 1, 32>}, {transform_indices = @transform_9, window_bounds = array<i64: 1, 1, 32>}, {pipeline_mode = #tpu.pipeline_mode<synchronous>, transform_indices = @transform_10, window_bounds = array<i64: 32, 32>}, {pipeline_mode = #tpu.pipeline_mode<synchronous>, transform_indices = @transform_11, window_bounds = array<i64: 1, 32>}, {pipeline_mode = #tpu.pipeline_mode<synchronous>, transform_indices = @transform_12, window_bounds = array<i64: 1, 32>}, {pipeline_mode = #tpu.pipeline_mode<synchronous>, transform_indices = @transform_13, window_bounds = array<i64: 1, 32>}, {transform_indices = @transform_14, window_bounds = array<i64: 8, 32>}]} {
    %c0_i32 = arith.constant 0 : i32
    %0 = arith.cmpi eq, %arg2, %c0_i32 : i32
    %1 = arith.extui %0 : i1 to i32
    %c0_i32_0 = arith.constant 0 : i32
    %2 = arith.cmpi ne, %1, %c0_i32_0 : i32
    scf.if %2 {
      %cst_17 = arith.constant 0.000000e+00 : f32
      %22 = vector.broadcast %cst_17 : f32 to vector<8x32xf32>
      %c0_18 = arith.constant 0 : index
      %c0_19 = arith.constant 0 : index
      %23 = vector.load %arg18[%c0_18, %c0_19] : memref<8x32xf32, #tpu.memory_space<vmem>>, vector<8x32xf32>
      tpu.vector_store %arg18[%c0_18, %c0_19], %22 {strides = array<i32>} : memref<8x32xf32, #tpu.memory_space<vmem>>, vector<8x32xf32>,
    } else {
    }
    %c0 = arith.constant 0 : index
    %c0_1 = arith.constant 0 : index
    %3 = vector.load %arg3[%c0, %c0_1] : memref<8x128xbf16, #tpu.memory_space<vmem>>, vector<8x128xbf16>
    %c1_i32 = arith.constant 1 : i32
    %4 = arith.cmpi eq, %arg1, %c1_i32 : i32
    %c0_2 = arith.constant 0 : index
    %c0_3 = arith.constant 0 : index
    %5 = vector.load %arg4[%c0_2, %c0_3] : memref<8x128xbf16, #tpu.memory_space<vmem>>, vector<8x128xbf16>
    %6 = arith.select %4, %5, %3 : vector<8x128xbf16>
    %c2_i32 = arith.constant 2 : i32
    %7 = arith.cmpi eq, %arg1, %c2_i32 : i32
    %c0_4 = arith.constant 0 : index
    %c0_5 = arith.constant 0 : index
    %8 = vector.load %arg5[%c0_4, %c0_5] : memref<8x128xbf16, #tpu.memory_space<vmem>>, vector<8x128xbf16>
    %9 = arith.select %7, %8, %6 : vector<8x128xbf16>
    %c3_i32 = arith.constant 3 : i32
    %10 = arith.cmpi eq, %arg1, %c3_i32 : i32
    %c0_6 = arith.constant 0 : index
    %c0_7 = arith.constant 0 : index
    %11 = vector.load %arg6[%c0_6, %c0_7] : memref<8x128xbf16, #tpu.memory_space<vmem>>, vector<8x128xbf16>
    %12 = arith.select %10, %11, %9 : vector<8x128xbf16>
    %c0_8 = arith.constant 0 : index
    %c0_9 = arith.constant 0 : index
    %13 = vector.load %arg18[%c0_8, %c0_9] : memref<8x32xf32, #tpu.memory_space<vmem>>, vector<8x32xf32>
    %c0_10 = arith.constant 0 : index
    %c0_11 = arith.constant 0 : index
    %c0_12 = arith.constant 0 : index
    %14 = vector.load %arg9[%c0_10, %c0_11, %c0_12] : memref<1x128x32xbf16, #tpu.memory_space<vmem>>, vector<1x128x32xbf16>
    %15 = vector.shape_cast %14 : vector<1x128x32xbf16> to vector<128x32xbf16>
    %cst = arith.constant dense<0.000000e+00> : vector<8x32xf32>
    %16 = tpu.matmul %12, %15, %cst {dimension_numbers = #tpu.dot_dimension_numbers<[1], [0], [0], [1], [0, 0, 1, 1], [], []>} : vector<8x128xbf16>, vector<128x32xbf16>, vector<8x32xf32> -> vector<8x32xf32>
    %17 = arith.addf %13, %16 : vector<8x32xf32>
    %c0_13 = arith.constant 0 : index
    %c0_14 = arith.constant 0 : index
    %18 = vector.load %arg18[%c0_13, %c0_14] : memref<8x32xf32, #tpu.memory_space<vmem>>, vector<8x32xf32>
    tpu.vector_store %arg18[%c0_13, %c0_14], %17 {strides = array<i32>} : memref<8x32xf32, #tpu.memory_space<vmem>>, vector<8x32xf32>,
    %c1_i32_15 = arith.constant 1 : i32
    %19 = arith.cmpi eq, %arg2, %c1_i32_15 : i32
    %20 = arith.extui %19 : i1 to i32
    %c0_i32_16 = arith.constant 0 : i32
    %21 = arith.cmpi ne, %20, %c0_i32_16 : i32
    scf.if %21 {
      %c0_17 = arith.constant 0 : index
      %c0_18 = arith.constant 0 : index
      %22 = vector.load %arg7[%c0_17, %c0_18] : memref<32x4xf32, #tpu.memory_space<vmem>>, vector<32x4xf32>
      %c0_19 = arith.constant 0 : index
      %c0_20 = arith.constant 0 : index
      %23 = vector.load %arg8[%c0_19, %c0_20] : memref<4x32xf32, #tpu.memory_space<vmem>>, vector<4x32xf32>
      %c0_21 = arith.constant 0 : index
      %c0_22 = arith.constant 0 : index
      %24 = vector.load %arg18[%c0_21, %c0_22] : memref<8x32xf32, #tpu.memory_space<vmem>>, vector<8x32xf32>
      %c0_23 = arith.constant 0 : index
      %c0_24 = arith.constant 0 : index
      %c0_25 = arith.constant 0 : index
      %25 = vector.load %arg10[%c0_23, %c0_24, %c0_25] : memref<1x1x32xf32, #tpu.memory_space<vmem>>, vector<1x1x32xf32>
      %26 = vector.shape_cast %25 : vector<1x1x32xf32> to vector<1x32xf32>
      %27 = vector.broadcast %26 : vector<1x32xf32> to vector<8x32xf32>
      %28 = arith.addf %24, %27 : vector<8x32xf32>
      %c0_26 = arith.constant 0 : index
      %c0_27 = arith.constant 0 : index
      %c0_28 = arith.constant 0 : index
      %29 = vector.load %arg11[%c0_26, %c0_27, %c0_28] : memref<1x1x32xf32, #tpu.memory_space<vmem>>, vector<1x1x32xf32>
      %30 = vector.shape_cast %29 : vector<1x1x32xf32> to vector<1x32xf32>
      %c0_29 = arith.constant 0 : index
      %c0_30 = arith.constant 0 : index
      %c0_31 = arith.constant 0 : index
      %31 = vector.load %arg12[%c0_29, %c0_30, %c0_31] : memref<1x1x32xf32, #tpu.memory_space<vmem>>, vector<1x1x32xf32>
      %32 = vector.shape_cast %31 : vector<1x1x32xf32> to vector<1x32xf32>
      %cst_32 = arith.constant dense<0.000000e+00> : vector<8x4xf32>
      %33 = tpu.matmul %28, %22, %cst_32 {dimension_numbers = #tpu.dot_dimension_numbers<[1], [0], [0], [1], [0, 0, 1, 1], [], []>} : vector<8x32xf32>, vector<32x4xf32>, vector<8x4xf32> -> vector<8x4xf32>
      %cst_33 = arith.constant 8.000000e+00 : f32
      %34 = vector.broadcast %cst_33 : f32 to vector<8x4xf32>
      %35 = arith.divf %33, %34 : vector<8x4xf32>
      %cst_34 = arith.constant dense<0.000000e+00> : vector<8x32xf32>
      %36 = tpu.matmul %35, %23, %cst_34 {dimension_numbers = #tpu.dot_dimension_numbers<[1], [0], [0], [1], [0, 0, 1, 1], [], []>} : vector<8x4xf32>, vector<4x32xf32>, vector<8x32xf32> -> vector<8x32xf32>
      %37 = arith.subf %28, %36 : vector<8x32xf32>
      %38 = arith.mulf %37, %37 : vector<8x32xf32>
      %cst_35 = arith.constant dense<0.000000e+00> : vector<8x4xf32>
      %39 = tpu.matmul %38, %22, %cst_35 {dimension_numbers = #tpu.dot_dimension_numbers<[1], [0], [0], [1], [0, 0, 1, 1], [], []>} : vector<8x32xf32>, vector<32x4xf32>, vector<8x4xf32> -> vector<8x4xf32>
      %cst_36 = arith.constant 8.000000e+00 : f32
      %40 = vector.broadcast %cst_36 : f32 to vector<8x4xf32>
      %41 = arith.divf %39, %40 : vector<8x4xf32>
      %cst_37 = arith.constant 9.99999974E-6 : f32
      %42 = vector.broadcast %cst_37 : f32 to vector<8x4xf32>
      %43 = arith.addf %41, %42 : vector<8x4xf32>
      %44 = math.rsqrt %43 : vector<8x4xf32>
      %cst_38 = arith.constant dense<0.000000e+00> : vector<8x32xf32>
      %45 = tpu.matmul %44, %23, %cst_38 {dimension_numbers = #tpu.dot_dimension_numbers<[1], [0], [0], [1], [0, 0, 1, 1], [], []>} : vector<8x4xf32>, vector<4x32xf32>, vector<8x32xf32> -> vector<8x32xf32>
      %46 = arith.mulf %37, %45 : vector<8x32xf32>
      %47 = vector.broadcast %30 : vector<1x32xf32> to vector<8x32xf32>
      %48 = arith.mulf %46, %47 : vector<8x32xf32>
      %49 = vector.broadcast %32 : vector<1x32xf32> to vector<8x32xf32>
      %50 = arith.addf %48, %49 : vector<8x32xf32>
      %cst_39 = arith.constant 0.000000e+00 : f32
      %51 = vector.broadcast %cst_39 : f32 to vector<8x32xf32>
      %52 = arith.maximumf %50, %51 : vector<8x32xf32>
      %c0_i32_40 = arith.constant 0 : i32
      %53 = arith.cmpi eq, %arg1, %c0_i32_40 : i32
      %54 = arith.extui %53 : i1 to i32
      %c0_i32_41 = arith.constant 0 : i32
      %55 = arith.cmpi ne, %54, %c0_i32_41 : i32
      scf.if %55 {
        %c0_46 = arith.constant 0 : index
        %c0_47 = arith.constant 0 : index
        %62 = vector.load %arg19[%c0_46, %c0_47] : memref<8x32xf32, #tpu.memory_space<vmem>>, vector<8x32xf32>
        tpu.vector_store %arg19[%c0_46, %c0_47], %52 {strides = array<i32>} : memref<8x32xf32, #tpu.memory_space<vmem>>, vector<8x32xf32>,
      } else {
      }
      %c0_i32_42 = arith.constant 0 : i32
      %56 = arith.cmpi sgt, %arg1, %c0_i32_42 : i32
      %57 = arith.extui %56 : i1 to i32
      %c0_i32_43 = arith.constant 0 : i32
      %58 = arith.cmpi ne, %57, %c0_i32_43 : i32
      scf.if %58 {
        %c0_46 = arith.constant 0 : index
        %c0_47 = arith.constant 0 : index
        %62 = vector.load %arg19[%c0_46, %c0_47] : memref<8x32xf32, #tpu.memory_space<vmem>>, vector<8x32xf32>
        %63 = arith.maximumf %62, %52 : vector<8x32xf32>
        %c0_48 = arith.constant 0 : index
        %c0_49 = arith.constant 0 : index
        %64 = vector.load %arg19[%c0_48, %c0_49] : memref<8x32xf32, #tpu.memory_space<vmem>>, vector<8x32xf32>
        tpu.vector_store %arg19[%c0_48, %c0_49], %63 {strides = array<i32>} : memref<8x32xf32, #tpu.memory_space<vmem>>, vector<8x32xf32>,
      } else {
      }
      %c3_i32_44 = arith.constant 3 : i32
      %59 = arith.cmpi eq, %arg1, %c3_i32_44 : i32
      %60 = arith.extui %59 : i1 to i32
      %c0_i32_45 = arith.constant 0 : i32
      %61 = arith.cmpi ne, %60, %c0_i32_45 : i32
      scf.if %61 {
        %c0_46 = arith.constant 0 : index
        %c0_47 = arith.constant 0 : index
        %62 = vector.load %arg19[%c0_46, %c0_47] : memref<8x32xf32, #tpu.memory_space<vmem>>, vector<8x32xf32>
        %63 = arith.truncf %62 : vector<8x32xf32> to vector<8x32xbf16>
        %c0_48 = arith.constant 0 : index
        %c0_49 = arith.constant 0 : index
        %64 = vector.load %arg13[%c0_48, %c0_49] : memref<32x32xbf16, #tpu.memory_space<vmem>>, vector<32x32xbf16>
        %cst_50 = arith.constant dense<0.000000e+00> : vector<8x32xf32>
        %65 = tpu.matmul %63, %64, %cst_50 {dimension_numbers = #tpu.dot_dimension_numbers<[1], [0], [0], [1], [0, 0, 1, 1], [], []>} : vector<8x32xbf16>, vector<32x32xbf16>, vector<8x32xf32> -> vector<8x32xf32>
        %c0_51 = arith.constant 0 : index
        %c0_52 = arith.constant 0 : index
        %66 = vector.load %arg14[%c0_51, %c0_52] : memref<1x32xf32, #tpu.memory_space<vmem>>, vector<1x32xf32>
        %67 = vector.broadcast %66 : vector<1x32xf32> to vector<8x32xf32>
        %68 = arith.addf %65, %67 : vector<8x32xf32>
        %c0_53 = arith.constant 0 : index
        %c0_54 = arith.constant 0 : index
        %69 = vector.load %arg15[%c0_53, %c0_54] : memref<1x32xf32, #tpu.memory_space<vmem>>, vector<1x32xf32>
        %c0_55 = arith.constant 0 : index
        %c0_56 = arith.constant 0 : index
        %70 = vector.load %arg16[%c0_55, %c0_56] : memref<1x32xf32, #tpu.memory_space<vmem>>, vector<1x32xf32>
        %cst_57 = arith.constant dense<0.000000e+00> : vector<8x4xf32>
        %71 = tpu.matmul %68, %22, %cst_57 {dimension_numbers = #tpu.dot_dimension_numbers<[1], [0], [0], [1], [0, 0, 1, 1], [], []>} : vector<8x32xf32>, vector<32x4xf32>, vector<8x4xf32> -> vector<8x4xf32>
        %cst_58 = arith.constant 8.000000e+00 : f32
        %72 = vector.broadcast %cst_58 : f32 to vector<8x4xf32>
        %73 = arith.divf %71, %72 : vector<8x4xf32>
        %cst_59 = arith.constant dense<0.000000e+00> : vector<8x32xf32>
        %74 = tpu.matmul %73, %23, %cst_59 {dimension_numbers = #tpu.dot_dimension_numbers<[1], [0], [0], [1], [0, 0, 1, 1], [], []>} : vector<8x4xf32>, vector<4x32xf32>, vector<8x32xf32> -> vector<8x32xf32>
        %75 = arith.subf %68, %74 : vector<8x32xf32>
        %76 = arith.mulf %75, %75 : vector<8x32xf32>
        %cst_60 = arith.constant dense<0.000000e+00> : vector<8x4xf32>
        %77 = tpu.matmul %76, %22, %cst_60 {dimension_numbers = #tpu.dot_dimension_numbers<[1], [0], [0], [1], [0, 0, 1, 1], [], []>} : vector<8x32xf32>, vector<32x4xf32>, vector<8x4xf32> -> vector<8x4xf32>
        %cst_61 = arith.constant 8.000000e+00 : f32
        %78 = vector.broadcast %cst_61 : f32 to vector<8x4xf32>
        %79 = arith.divf %77, %78 : vector<8x4xf32>
        %cst_62 = arith.constant 9.99999974E-6 : f32
        %80 = vector.broadcast %cst_62 : f32 to vector<8x4xf32>
        %81 = arith.addf %79, %80 : vector<8x4xf32>
        %82 = math.rsqrt %81 : vector<8x4xf32>
        %cst_63 = arith.constant dense<0.000000e+00> : vector<8x32xf32>
        %83 = tpu.matmul %82, %23, %cst_63 {dimension_numbers = #tpu.dot_dimension_numbers<[1], [0], [0], [1], [0, 0, 1, 1], [], []>} : vector<8x4xf32>, vector<4x32xf32>, vector<8x32xf32> -> vector<8x32xf32>
        %84 = arith.mulf %75, %83 : vector<8x32xf32>
        %85 = vector.broadcast %69 : vector<1x32xf32> to vector<8x32xf32>
        %86 = arith.mulf %84, %85 : vector<8x32xf32>
        %87 = vector.broadcast %70 : vector<1x32xf32> to vector<8x32xf32>
        %88 = arith.addf %86, %87 : vector<8x32xf32>
        %cst_64 = arith.constant 0.000000e+00 : f32
        %89 = vector.broadcast %cst_64 : f32 to vector<8x32xf32>
        %90 = arith.maximumf %88, %89 : vector<8x32xf32>
        %c0_65 = arith.constant 0 : index
        %c0_66 = arith.constant 0 : index
        %91 = vector.load %arg17[%c0_65, %c0_66] : memref<8x32xf32, #tpu.memory_space<vmem>>, vector<8x32xf32>
        tpu.vector_store %arg17[%c0_65, %c0_66], %90 {strides = array<i32>} : memref<8x32xf32, #tpu.memory_space<vmem>>, vector<8x32xf32>,
      } else {
      }
    } else {
    }
    return
  }
  func.func @transform_0(%arg0: i32, %arg1: i32, %arg2: i32) -> (i32, i32) {
    %c0_i32 = arith.constant 0 : i32
    %0 = arith.cmpi eq, %arg1, %c0_i32 : i32
    %c0_i32_0 = arith.constant 0 : i32
    %1 = arith.select %0, %arg2, %c0_i32_0 : i32
    %c0_i32_1 = arith.constant 0 : i32
    return %arg0, %1 : i32, i32
  }
  func.func @transform_1(%arg0: i32, %arg1: i32, %arg2: i32) -> (i32, i32) {
    %c1_i32 = arith.constant 1 : i32
    %0 = arith.cmpi eq, %arg1, %c1_i32 : i32
    %c0_i32 = arith.constant 0 : i32
    %1 = arith.select %0, %arg2, %c0_i32 : i32
    %c0_i32_0 = arith.constant 0 : i32
    return %arg0, %1 : i32, i32
  }
  func.func @transform_2(%arg0: i32, %arg1: i32, %arg2: i32) -> (i32, i32) {
    %c2_i32 = arith.constant 2 : i32
    %0 = arith.cmpi eq, %arg1, %c2_i32 : i32
    %c0_i32 = arith.constant 0 : i32
    %1 = arith.select %0, %arg2, %c0_i32 : i32
    %c0_i32_0 = arith.constant 0 : i32
    return %arg0, %1 : i32, i32
  }
  func.func @transform_3(%arg0: i32, %arg1: i32, %arg2: i32) -> (i32, i32) {
    %c3_i32 = arith.constant 3 : i32
    %0 = arith.cmpi eq, %arg1, %c3_i32 : i32
    %c0_i32 = arith.constant 0 : i32
    %1 = arith.select %0, %arg2, %c0_i32 : i32
    %c0_i32_0 = arith.constant 0 : i32
    return %arg0, %1 : i32, i32
  }
  func.func @transform_4(%arg0: i32, %arg1: i32, %arg2: i32) -> (i32, i32) {
    %c0_i32 = arith.constant 0 : i32
    %c0_i32_0 = arith.constant 0 : i32
    %c0_i32_1 = arith.constant 0 : i32
    return %c0_i32, %c0_i32_0 : i32, i32
  }
  func.func @transform_5(%arg0: i32, %arg1: i32, %arg2: i32) -> (i32, i32) {
    %c0_i32 = arith.constant 0 : i32
    %c0_i32_0 = arith.constant 0 : i32
    %c0_i32_1 = arith.constant 0 : i32
    return %c0_i32, %c0_i32_0 : i32, i32
  }
  func.func @transform_6(%arg0: i32, %arg1: i32, %arg2: i32) -> (i32, i32, i32) {
    %c0_i32 = arith.constant 0 : i32
    %c0_i32_0 = arith.constant 0 : i32
    return %arg1, %arg2, %c0_i32 : i32, i32, i32
  }
  func.func @transform_7(%arg0: i32, %arg1: i32, %arg2: i32) -> (i32, i32, i32) {
    %c0_i32 = arith.constant 0 : i32
    %c0_i32_0 = arith.constant 0 : i32
    %c0_i32_1 = arith.constant 0 : i32
    return %arg1, %c0_i32, %c0_i32_0 : i32, i32, i32
  }
  func.func @transform_8(%arg0: i32, %arg1: i32, %arg2: i32) -> (i32, i32, i32) {
    %c0_i32 = arith.constant 0 : i32
    %c0_i32_0 = arith.constant 0 : i32
    %c0_i32_1 = arith.constant 0 : i32
    return %arg1, %c0_i32, %c0_i32_0 : i32, i32, i32
  }
  func.func @transform_9(%arg0: i32, %arg1: i32, %arg2: i32) -> (i32, i32, i32) {
    %c0_i32 = arith.constant 0 : i32
    %c0_i32_0 = arith.constant 0 : i32
    %c0_i32_1 = arith.constant 0 : i32
    return %arg1, %c0_i32, %c0_i32_0 : i32, i32, i32
  }
  func.func @transform_10(%arg0: i32, %arg1: i32, %arg2: i32) -> (i32, i32) {
    %c0_i32 = arith.constant 0 : i32
    %c0_i32_0 = arith.constant 0 : i32
    %c0_i32_1 = arith.constant 0 : i32
    return %c0_i32, %c0_i32_0 : i32, i32
  }
  func.func @transform_11(%arg0: i32, %arg1: i32, %arg2: i32) -> (i32, i32) {
    %c0_i32 = arith.constant 0 : i32
    %c0_i32_0 = arith.constant 0 : i32
    %c0_i32_1 = arith.constant 0 : i32
    return %c0_i32, %c0_i32_0 : i32, i32
  }
  func.func @transform_12(%arg0: i32, %arg1: i32, %arg2: i32) -> (i32, i32) {
    %c0_i32 = arith.constant 0 : i32
    %c0_i32_0 = arith.constant 0 : i32
    %c0_i32_1 = arith.constant 0 : i32
    return %c0_i32, %c0_i32_0 : i32, i32
  }
  func.func @transform_13(%arg0: i32, %arg1: i32, %arg2: i32) -> (i32, i32) {
    %c0_i32 = arith.constant 0 : i32
    %c0_i32_0 = arith.constant 0 : i32
    %c0_i32_1 = arith.constant 0 : i32
    return %c0_i32, %c0_i32_0 : i32, i32
  }
  func.func @transform_14(%arg0: i32, %arg1: i32, %arg2: i32) -> (i32, i32) {
    %c0_i32 = arith.constant 0 : i32
    %c0_i32_0 = arith.constant 0 : i32
    return %arg0, %c0_i32 : i32, i32
  }
}

</mosaic_0001>

<llo_original>
// kernel: tpu_custom_call.1
$region0: #{tpu_custom_call.1}
  #allocation0 [shape = 'u32[]', space=smem, size = 0x4, offset = 0x4, fixed_abs, tag = 'smem constant byte address 0x4 - core index']
  #allocation1 [shape = 'u32[144,128]{1,0:T(1,128)}', space=vmem, size = 0x12000, scoped, tag = 'internal scratch']
  #allocation2 [shape = 'f32[8,32]{1,0:T(8,128)}', space=vmem, size = 0x1000, scoped, tag = 'scratch operand']
  #allocation3 [shape = 'f32[8,32]{1,0:T(8,128)}', space=vmem, size = 0x1000, scoped, tag = 'scratch operand']
  %s0 = inlined_call_operand.vmem [shape: bf16[16,256], index: 0, kind: input, shape index: {}]
  %s1 = inlined_call_operand.vmem [shape: bf16[16,256], index: 1, kind: input, shape index: {}]
  %s2 = inlined_call_operand.vmem [shape: bf16[16,256], index: 2, kind: input, shape index: {}]
  %s3 = inlined_call_operand.vmem [shape: bf16[16,256], index: 3, kind: input, shape index: {}]
  %s4 = inlined_call_operand.vmem [shape: f32[32,4], index: 4, kind: input, shape index: {}]
  %s5 = inlined_call_operand.vmem [shape: f32[4,32], index: 5, kind: input, shape index: {}]
  %s6 = inlined_call_operand.vmem [shape: bf16[4,256,32], index: 6, kind: input, shape index: {}]
  %s7 = inlined_call_operand.vmem [shape: f32[4,1,32], index: 7, kind: input, shape index: {}]
  %s8 = inlined_call_operand.vmem [shape: f32[4,1,32], index: 8, kind: input, shape index: {}]
  %s9 = inlined_call_operand.vmem [shape: f32[4,1,32], index: 9, kind: input, shape index: {}]
  %s10 = inlined_call_operand.vmem [shape: bf16[32,32], index: 10, kind: input, shape index: {}]
  %s11 = inlined_call_operand.vmem [shape: f32[1,32], index: 11, kind: input, shape index: {}]
  %s12 = inlined_call_operand.vmem [shape: f32[1,32], index: 12, kind: input, shape index: {}]
  %s13 = inlined_call_operand.vmem [shape: f32[1,32], index: 13, kind: input, shape index: {}]
  %s14 = inlined_call_operand.hbm [shape: f32[16,32], index: 14, kind: output, shape index: {}]
  %s15 = sld [smem:[#allocation0]]
  $region109: #{tpu_custom_call.1} parent=0
    _
  %s17 = ssub.s32 1, %s15
  %s18 = scalar_select 0, %s17, %s15
  $region1: #{tpu_custom_call.1} parent=0
    #allocation4 [shape = 'u8[8192]{0}', space=vmem, size = 0x2000, scoped, tag = 'output window, operand 0']
    #allocation5 [shape = 's32[2]{0}', space=sflag, size = 0x8, scoped, tag = 'scoped memory for tpu_custom_call.1']
    %19 = vsyncpa [#allocation5], 0
    %s20 = scalar_lea.sflag [#allocation5], 1
    %21 = vsyncpa %s20, 0
    loop: start=0, step=1, limit=18
    $region2: #{tpu_custom_call.1} parent=1 // loop_pre_header
      _
    $region3: #{tpu_custom_call.1} parent=1 // loop_header
      %s23 = sphi 0, %s27
      %p24 = scmp.ge.s32.totalorder %s23, 18
      %s30 = sphi 0, %s49
      %s31 = sphi 0, %s45
      %s32 = sphi 0, %s41
      %s33 = sphi 0, %s30
      %s34 = sphi 0, %s31
      %s35 = sphi 0, %s32
      %s36 = sphi 0, %s33
      %s37 = sphi 0, %s34
      %s38 = sphi 0, %s35
      %s58 = sphi 0, %s60
      %s61 = sphi 0, %s58
      %s62 = sphi 0, %s61
      %s78 = sphi 0, %s62
      %s90 = sphi 0, %s92
      %s93 = sphi 0, %s90
      %s94 = sphi 0, %s93
      %s110 = sphi 0, %s94
      %s122 = sphi 0, %s124
      %s125 = sphi 0, %s122
      %s126 = sphi 0, %s125
      %s142 = sphi 0, %s126
      %s154 = sphi 0, %s156
      %s157 = sphi 0, %s154
      %s158 = sphi 0, %s157
      %s174 = sphi 0, %s158
      %s178 = sphi 0, %s178
      %s180 = sphi 0, %s178
      %s181 = sphi 0, %s180
      %s195 = sphi 0, %s181
      %s199 = sphi 0, %s199
      %s201 = sphi 0, %s199
      %s202 = sphi 0, %s201
      %s216 = sphi 0, %s202
      %s224 = sphi 0, %s226
      %s227 = sphi 0, %s224
      %s228 = sphi 0, %s227
      %s244 = sphi 0, %s228
      %s250 = sphi 0, %s252
      %s253 = sphi 0, %s250
      %s254 = sphi 0, %s253
      %s270 = sphi 0, %s254
      %s276 = sphi 0, %s278
      %s279 = sphi 0, %s276
      %s280 = sphi 0, %s279
      %s296 = sphi 0, %s280
      %s302 = sphi 0, %s304
      %s305 = sphi 0, %s302
      %s306 = sphi 0, %s305
      %s322 = sphi 0, %s306
      %s326 = sphi 0, %s326
      %s328 = sphi 0, %s326
      %s329 = sphi 0, %s328
      %s343 = sphi 0, %s329
      %s347 = sphi 0, %s347
      %s349 = sphi 0, %s347
      %s350 = sphi 0, %s349
      %s364 = sphi 0, %s350
      %s368 = sphi 0, %s368
      %s370 = sphi 0, %s368
      %s371 = sphi 0, %s370
      %s385 = sphi 0, %s371
      %s389 = sphi 0, %s389
      %s391 = sphi 0, %s389
      %s392 = sphi 0, %s391
      %s406 = sphi 0, %s392
      %s412 = sphi 0, %s414
      %s415 = sphi 0, %s412
      %s416 = sphi 0, %s415
      %s432 = sphi 0, %s416
    $region4: #{tpu_custom_call.1} parent=1 // loop_header_branch
      %26 = sbr.rel (%p24) target = $region8
    $region5: #{tpu_custom_call.1} parent=1 // loop_body
      %s28 = ssub.s32 %s23, 1
      %s29 = ssub.s32 %s23, 2
      %s39 = sadd.s32 1, %s32
      %p40 = scmp.ge.s32.totalorder %s39, 2
      %s41 = scalar_select %p40, 0, %s39
      %s42 = sadd.s32 1, %s31
      %s43 = scalar_select %p40, %s42, %s31
      %p44 = scmp.ge.s32.totalorder %s43, 4
      %s45 = scalar_select %p44, 0, %s43
      %s46 = sadd.s32 1, %s30
      %s47 = scalar_select %p44, %s46, %s30
      %p48 = scmp.ge.s32.totalorder %s47, 2
      %s49 = scalar_select %p48, 0, %s47
      %p50 = scmp.eq.s32.totalorder %s31, 0
      %s51 = scalar_select %p50, %s32, 0
      %p52 = scmp.eq.s32.totalorder %s45, 0
      %s53 = scalar_select %p52, %s41, 0
      %s54 = ssub.s32 %s30, %s49
      %s55 = ssub.s32 %s51, %s53
      %s56 = sor.u32 %s54, %s55
      %p57 = scmp.eq.s32.totalorder %s56, 0
      %s59 = sadd.s32 %s58, 1
      %s60 = scalar_select %p57, %s58, %s59
      %p63 = pneg %p57
      %p64 = scmp.eq.s32.totalorder %s23, 15
      %p65 = por %p63, %p64
      %p66 = scmp.ne.s32.totalorder %s58, %s61
      %p67 = scmp.eq.s32.totalorder %s23, 0
      %p68 = por %p66, %p67
      %p69 = scmp.ne.s32.totalorder %s58, %s61
      %p70 = scmp.eq.s32.totalorder %s28, 15
      %p71 = por %p69, %p70
      %p72 = scmp.ne.s32.totalorder %s61, %s62
      %p73 = scmp.eq.s32.totalorder %s28, 0
      %p74 = por %p72, %p73
      %p75 = scmp.ne.s32.totalorder %s61, %s62
      %p76 = scmp.eq.s32.totalorder %s29, 15
      %p77 = por %p75, %p76
      %p79 = scmp.ne.s32.totalorder %s62, %s78
      %p80 = scmp.eq.s32.totalorder %s29, 0
      %p81 = por %p79, %p80
      %p82 = scmp.eq.s32.totalorder %s31, 1
      %s83 = scalar_select %p82, %s32, 0
      %p84 = scmp.eq.s32.totalorder %s45, 1
      %s85 = scalar_select %p84, %s41, 0
      %s86 = ssub.s32 %s30, %s49
      %s87 = ssub.s32 %s83, %s85
      %s88 = sor.u32 %s86, %s87
      %p89 = scmp.eq.s32.totalorder %s88, 0
      %s91 = sadd.s32 %s90, 1
      %s92 = scalar_select %p89, %s90, %s91
      %p95 = pneg %p89
      %p96 = scmp.eq.s32.totalorder %s23, 15
      %p97 = por %p95, %p96
      %p98 = scmp.ne.s32.totalorder %s90, %s93
      %p99 = scmp.eq.s32.totalorder %s23, 0
      %p100 = por %p98, %p99
      %p101 = scmp.ne.s32.totalorder %s90, %s93
      %p102 = scmp.eq.s32.totalorder %s28, 15
      %p103 = por %p101, %p102
      %p104 = scmp.ne.s32.totalorder %s93, %s94
      %p105 = scmp.eq.s32.totalorder %s28, 0
      %p106 = por %p104, %p105
      %p107 = scmp.ne.s32.totalorder %s93, %s94
      %p108 = scmp.eq.s32.totalorder %s29, 15
      %p109 = por %p107, %p108
      %p111 = scmp.ne.s32.totalorder %s94, %s110
      %p112 = scmp.eq.s32.totalorder %s29, 0
      %p113 = por %p111, %p112
      %p114 = scmp.eq.s32.totalorder %s31, 2
      %s115 = scalar_select %p114, %s32, 0
      %p116 = scmp.eq.s32.totalorder %s45, 2
      %s117 = scalar_select %p116, %s41, 0
      %s118 = ssub.s32 %s30, %s49
      %s119 = ssub.s32 %s115, %s117
      %s120 = sor.u32 %s118, %s119
      %p121 = scmp.eq.s32.totalorder %s120, 0
      %s123 = sadd.s32 %s122, 1
      %s124 = scalar_select %p121, %s122, %s123
      %p127 = pneg %p121
      %p128 = scmp.eq.s32.totalorder %s23, 15
      %p129 = por %p127, %p128
      %p130 = scmp.ne.s32.totalorder %s122, %s125
      %p131 = scmp.eq.s32.totalorder %s23, 0
      %p132 = por %p130, %p131
      %p133 = scmp.ne.s32.totalorder %s122, %s125
      %p134 = scmp.eq.s32.totalorder %s28, 15
      %p135 = por %p133, %p134
      %p136 = scmp.ne.s32.totalorder %s125, %s126
      %p137 = scmp.eq.s32.totalorder %s28, 0
      %p138 = por %p136, %p137
      %p139 = scmp.ne.s32.totalorder %s125, %s126
      %p140 = scmp.eq.s32.totalorder %s29, 15
      %p141 = por %p139, %p140
      %p143 = scmp.ne.s32.totalorder %s126, %s142
      %p144 = scmp.eq.s32.totalorder %s29, 0
      %p145 = por %p143, %p144
      %p146 = scmp.eq.s32.totalorder %s31, 3
      %s147 = scalar_select %p146, %s32, 0
      %p148 = scmp.eq.s32.totalorder %s45, 3
      %s149 = scalar_select %p148, %s41, 0
      %s150 = ssub.s32 %s30, %s49
      %s151 = ssub.s32 %s147, %s149
      %s152 = sor.u32 %s150, %s151
      %p153 = scmp.eq.s32.totalorder %s152, 0
      %s155 = sadd.s32 %s154, 1
      %s156 = scalar_select %p153, %s154, %s155
      %p159 = pneg %p153
      %p160 = scmp.eq.s32.totalorder %s23, 15
      %p161 = por %p159, %p160
      %p162 = scmp.ne.s32.totalorder %s154, %s157
      %p163 = scmp.eq.s32.totalorder %s23, 0
      %p164 = por %p162, %p163
      %p165 = scmp.ne.s32.totalorder %s154, %s157
      %p166 = scmp.eq.s32.totalorder %s28, 15
      %p167 = por %p165, %p166
      %p168 = scmp.ne.s32.totalorder %s157, %s158
      %p169 = scmp.eq.s32.totalorder %s28, 0
      %p170 = por %p168, %p169
      %p171 = scmp.ne.s32.totalorder %s157, %s158
      %p172 = scmp.eq.s32.totalorder %s29, 15
      %p173 = por %p171, %p172
      %p175 = scmp.ne.s32.totalorder %s158, %s174
      %p176 = scmp.eq.s32.totalorder %s29, 0
      %p177 = por %p175, %p176
      %s179 = sadd.s32 %s178, 1
      %p182 = scmp.eq.s32.totalorder %s23, 15
      %p183 = scmp.ne.s32.totalorder %s178, %s180
      %p184 = scmp.eq.s32.totalorder %s23, 0
      %p185 = por %p183, %p184
      %p186 = scmp.ne.s32.totalorder %s178, %s180
      %p187 = scmp.eq.s32.totalorder %s28, 15
      %p188 = por %p186, %p187
      %p189 = scmp.ne.s32.totalorder %s180, %s181
      %p190 = scmp.eq.s32.totalorder %s28, 0
      %p191 = por %p189, %p190
      %p192 = scmp.ne.s32.totalorder %s180, %s181
      %p193 = scmp.eq.s32.totalorder %s29, 15
      %p194 = por %p192, %p193
      %p196 = scmp.ne.s32.totalorder %s181, %s195
      %p197 = scmp.eq.s32.totalorder %s29, 0
      %p198 = por %p196, %p197
      %s200 = sadd.s32 %s199, 1
      %p203 = scmp.eq.s32.totalorder %s23, 15
      %p204 = scmp.ne.s32.totalorder %s199, %s201
      %p205 = scmp.eq.s32.totalorder %s23, 0
      %p206 = por %p204, %p205
      %p207 = scmp.ne.s32.totalorder %s199, %s201
      %p208 = scmp.eq.s32.totalorder %s28, 15
      %p209 = por %p207, %p208
      %p210 = scmp.ne.s32.totalorder %s201, %s202
      %p211 = scmp.eq.s32.totalorder %s28, 0
      %p212 = por %p210, %p211
      %p213 = scmp.ne.s32.totalorder %s201, %s202
      %p214 = scmp.eq.s32.totalorder %s29, 15
      %p215 = por %p213, %p214
      %p217 = scmp.ne.s32.totalorder %s202, %s216
      %p218 = scmp.eq.s32.totalorder %s29, 0
      %p219 = por %p217, %p218
      %s220 = ssub.s32 %s31, %s45
      %s221 = ssub.s32 %s32, %s41
      %s222 = sor.u32 %s220, %s221
      %p223 = scmp.eq.s32.totalorder %s222, 0
      %s225 = sadd.s32 %s224, 1
      %s226 = scalar_select %p223, %s224, %s225
      %p229 = pneg %p223
      %p230 = scmp.eq.s32.totalorder %s23, 15
      %p231 = por %p229, %p230
      %p232 = scmp.ne.s32.totalorder %s224, %s227
      %p233 = scmp.eq.s32.totalorder %s23, 0
      %p234 = por %p232, %p233
      %p235 = scmp.ne.s32.totalorder %s224, %s227
      %p236 = scmp.eq.s32.totalorder %s28, 15
      %p237 = por %p235, %p236
      %p238 = scmp.ne.s32.totalorder %s227, %s228
      %p239 = scmp.eq.s32.totalorder %s28, 0
      %p240 = por %p238, %p239
      %p241 = scmp.ne.s32.totalorder %s227, %s228
      %p242 = scmp.eq.s32.totalorder %s29, 15
      %p243 = por %p241, %p242
      %p245 = scmp.ne.s32.totalorder %s228, %s244
      %p246 = scmp.eq.s32.totalorder %s29, 0
      %p247 = por %p245, %p246
      %s248 = ssub.s32 %s31, %s45
      %p249 = scmp.eq.s32.totalorder %s248, 0
      %s251 = sadd.s32 %s250, 1
      %s252 = scalar_select %p249, %s250, %s251
      %p255 = pneg %p249
      %p256 = scmp.eq.s32.totalorder %s23, 15
      %p257 = por %p255, %p256
      %p258 = scmp.ne.s32.totalorder %s250, %s253
      %p259 = scmp.eq.s32.totalorder %s23, 0
      %p260 = por %p258, %p259
      %p261 = scmp.ne.s32.totalorder %s250, %s253
      %p262 = scmp.eq.s32.totalorder %s28, 15
      %p263 = por %p261, %p262
      %p264 = scmp.ne.s32.totalorder %s253, %s254
      %p265 = scmp.eq.s32.totalorder %s28, 0
      %p266 = por %p264, %p265
      %p267 = scmp.ne.s32.totalorder %s253, %s254
      %p268 = scmp.eq.s32.totalorder %s29, 15
      %p269 = por %p267, %p268
      %p271 = scmp.ne.s32.totalorder %s254, %s270
      %p272 = scmp.eq.s32.totalorder %s29, 0
      %p273 = por %p271, %p272
      %s274 = ssub.s32 %s31, %s45
      %p275 = scmp.eq.s32.totalorder %s274, 0
      %s277 = sadd.s32 %s276, 1
      %s278 = scalar_select %p275, %s276, %s277
      %p281 = pneg %p275
      %p282 = scmp.eq.s32.totalorder %s23, 15
      %p283 = por %p281, %p282
      %p284 = scmp.ne.s32.totalorder %s276, %s279
      %p285 = scmp.eq.s32.totalorder %s23, 0
      %p286 = por %p284, %p285
      %p287 = scmp.ne.s32.totalorder %s276, %s279
      %p288 = scmp.eq.s32.totalorder %s28, 15
      %p289 = por %p287, %p288
      %p290 = scmp.ne.s32.totalorder %s279, %s280
      %p291 = scmp.eq.s32.totalorder %s28, 0
      %p292 = por %p290, %p291
      %p293 = scmp.ne.s32.totalorder %s279, %s280
      %p294 = scmp.eq.s32.totalorder %s29, 15
      %p295 = por %p293, %p294
      %p297 = scmp.ne.s32.totalorder %s280, %s296
      %p298 = scmp.eq.s32.totalorder %s29, 0
      %p299 = por %p297, %p298
      %s300 = ssub.s32 %s31, %s45
      %p301 = scmp.eq.s32.totalorder %s300, 0
      %s303 = sadd.s32 %s302, 1
      %s304 = scalar_select %p301, %s302, %s303
      %p307 = pneg %p301
      %p308 = scmp.eq.s32.totalorder %s23, 15
      %p309 = por %p307, %p308
      %p310 = scmp.ne.s32.totalorder %s302, %s305
      %p311 = scmp.eq.s32.totalorder %s23, 0
      %p312 = por %p310, %p311
      %p313 = scmp.ne.s32.totalorder %s302, %s305
      %p314 = scmp.eq.s32.totalorder %s28, 15
      %p315 = por %p313, %p314
      %p316 = scmp.ne.s32.totalorder %s305, %s306
      %p317 = scmp.eq.s32.totalorder %s28, 0
      %p318 = por %p316, %p317
      %p319 = scmp.ne.s32.totalorder %s305, %s306
      %p320 = scmp.eq.s32.totalorder %s29, 15
      %p321 = por %p319, %p320
      %p323 = scmp.ne.s32.totalorder %s306, %s322
      %p324 = scmp.eq.s32.totalorder %s29, 0
      %p325 = por %p323, %p324
      %s327 = sadd.s32 %s326, 1
      %p330 = scmp.eq.s32.totalorder %s23, 15
      %p331 = scmp.ne.s32.totalorder %s326, %s328
      %p332 = scmp.eq.s32.totalorder %s23, 0
      %p333 = por %p331, %p332
      %p334 = scmp.ne.s32.totalorder %s326, %s328
      %p335 = scmp.eq.s32.totalorder %s28, 15
      %p336 = por %p334, %p335
      %p337 = scmp.ne.s32.totalorder %s328, %s329
      %p338 = scmp.eq.s32.totalorder %s28, 0
      %p339 = por %p337, %p338
      %p340 = scmp.ne.s32.totalorder %s328, %s329
      %p341 = scmp.eq.s32.totalorder %s29, 15
      %p342 = por %p340, %p341
      %p344 = scmp.ne.s32.totalorder %s329, %s343
      %p345 = scmp.eq.s32.totalorder %s29, 0
      %p346 = por %p344, %p345
      %s348 = sadd.s32 %s347, 1
      %p351 = scmp.eq.s32.totalorder %s23, 15
      %p352 = scmp.ne.s32.totalorder %s347, %s349
      %p353 = scmp.eq.s32.totalorder %s23, 0
      %p354 = por %p352, %p353
      %p355 = scmp.ne.s32.totalorder %s347, %s349
      %p356 = scmp.eq.s32.totalorder %s28, 15
      %p357 = por %p355, %p356
      %p358 = scmp.ne.s32.totalorder %s349, %s350
      %p359 = scmp.eq.s32.totalorder %s28, 0
      %p360 = por %p358, %p359
      %p361 = scmp.ne.s32.totalorder %s349, %s350
      %p362 = scmp.eq.s32.totalorder %s29, 15
      %p363 = por %p361, %p362
      %p365 = scmp.ne.s32.totalorder %s350, %s364
      %p366 = scmp.eq.s32.totalorder %s29, 0
      %p367 = por %p365, %p366
      %s369 = sadd.s32 %s368, 1
      %p372 = scmp.eq.s32.totalorder %s23, 15
      %p373 = scmp.ne.s32.totalorder %s368, %s370
      %p374 = scmp.eq.s32.totalorder %s23, 0
      %p375 = por %p373, %p374
      %p376 = scmp.ne.s32.totalorder %s368, %s370
      %p377 = scmp.eq.s32.totalorder %s28, 15
      %p378 = por %p376, %p377
      %p379 = scmp.ne.s32.totalorder %s370, %s371
      %p380 = scmp.eq.s32.totalorder %s28, 0
      %p381 = por %p379, %p380
      %p382 = scmp.ne.s32.totalorder %s370, %s371
      %p383 = scmp.eq.s32.totalorder %s29, 15
      %p384 = por %p382, %p383
      %p386 = scmp.ne.s32.totalorder %s371, %s385
      %p387 = scmp.eq.s32.totalorder %s29, 0
      %p388 = por %p386, %p387
      %s390 = sadd.s32 %s389, 1
      %p393 = scmp.eq.s32.totalorder %s23, 15
      %p394 = scmp.ne.s32.totalorder %s389, %s391
      %p395 = scmp.eq.s32.totalorder %s23, 0
      %p396 = por %p394, %p395
      %p397 = scmp.ne.s32.totalorder %s389, %s391
      %p398 = scmp.eq.s32.totalorder %s28, 15
      %p399 = por %p397, %p398
      %p400 = scmp.ne.s32.totalorder %s391, %s392
      %p401 = scmp.eq.s32.totalorder %s28, 0
      %p402 = por %p400, %p401
      %p403 = scmp.ne.s32.totalorder %s391, %s392
      %p404 = scmp.eq.s32.totalorder %s29, 15
      %p405 = por %p403, %p404
      %p407 = scmp.ne.s32.totalorder %s392, %s406
      %p408 = scmp.eq.s32.totalorder %s29, 0
      %p409 = por %p407, %p408
      %s410 = ssub.s32 %s30, %s49
      %p411 = scmp.eq.s32.totalorder %s410, 0
      %s413 = sadd.s32 %s412, 1
      %s414 = scalar_select %p411, %s412, %s413
      %p417 = pneg %p411
      %p418 = scmp.eq.s32.totalorder %s23, 15
      %p419 = por %p417, %p418
      %p420 = scmp.ne.s32.totalorder %s412, %s415
      %p421 = scmp.eq.s32.totalorder %s23, 0
      %p422 = por %p420, %p421
      %p423 = scmp.ne.s32.totalorder %s412, %s415
      %p424 = scmp.eq.s32.totalorder %s28, 15
      %p425 = por %p423, %p424
      %p426 = scmp.ne.s32.totalorder %s415, %s416
      %p427 = scmp.eq.s32.totalorder %s28, 0
      %p428 = por %p426, %p427
      %p429 = scmp.ne.s32.totalorder %s415, %s416
      %p430 = scmp.eq.s32.totalorder %s29, 15
      %p431 = por %p429, %p430
      %p433 = scmp.ne.s32.totalorder %s416, %s432
      %p434 = scmp.eq.s32.totalorder %s29, 0
      %p435 = por %p433, %p434
      %p436 = scmp.le.s32.totalorder 1, %s23
      %p437 = scmp.lt.s32.totalorder %s23, 17
      %p438 = pnand %p436, %p437
      %p439 = pneg %p438
      // Predicated region
      $region9: #{tpu_custom_call.1} parent=5 // pred_check
        _
      $region10: #{tpu_custom_call.1} parent=5 // pred_check_branch
        %441 = sbr.rel (%p438) target = $region12
      $region11: #{tpu_custom_call.1} parent=5 // pred_region
        %s442 = ssub.s32 %s23, 1
        // Predicated region
        $region13: #{tpu_custom_call.1} parent=11 // pred_check
          %p443 = pneg %p191
        $region14: #{tpu_custom_call.1} parent=11 // pred_check_branch
          %445 = sbr.rel (%p443) target = $region16
        $region15: #{tpu_custom_call.1} parent=11 // pred_region
          _
        $region16: #{tpu_custom_call.1} parent=11 // pred_fallthru
          _
        // Predicated region
        $region17: #{tpu_custom_call.1} parent=11 // pred_check
          %p446 = pneg %p212
        $region18: #{tpu_custom_call.1} parent=11 // pred_check_branch
          %448 = sbr.rel (%p446) target = $region20
        $region19: #{tpu_custom_call.1} parent=11 // pred_region
          _
        $region20: #{tpu_custom_call.1} parent=11 // pred_fallthru
          _
        // Predicated region
        $region21: #{tpu_custom_call.1} parent=11 // pred_check
          %p449 = pneg %p339
        $region22: #{tpu_custom_call.1} parent=11 // pred_check_branch
          %451 = sbr.rel (%p449) target = $region24
        $region23: #{tpu_custom_call.1} parent=11 // pred_region
          _
        $region24: #{tpu_custom_call.1} parent=11 // pred_fallthru
          _
        // Predicated region
        $region25: #{tpu_custom_call.1} parent=11 // pred_check
          %p452 = pneg %p360
        $region26: #{tpu_custom_call.1} parent=11 // pred_check_branch
          %454 = sbr.rel (%p452) target = $region28
        $region27: #{tpu_custom_call.1} parent=11 // pred_region
          _
        $region28: #{tpu_custom_call.1} parent=11 // pred_fallthru
          _
        // Predicated region
        $region29: #{tpu_custom_call.1} parent=11 // pred_check
          %p455 = pneg %p381
        $region30: #{tpu_custom_call.1} parent=11 // pred_check_branch
          %457 = sbr.rel (%p455) target = $region32
        $region31: #{tpu_custom_call.1} parent=11 // pred_region
          _
        $region32: #{tpu_custom_call.1} parent=11 // pred_fallthru
          _
        // Predicated region
        $region33: #{tpu_custom_call.1} parent=11 // pred_check
          %p458 = pneg %p402
        $region34: #{tpu_custom_call.1} parent=11 // pred_check_branch
          %460 = sbr.rel (%p458) target = $region36
        $region35: #{tpu_custom_call.1} parent=11 // pred_region
          _
        $region36: #{tpu_custom_call.1} parent=11 // pred_fallthru
          _
      $region12: #{tpu_custom_call.1} parent=5 // pred_fallthru
        _
      %p461 = scmp.lt.s32.totalorder %s23, 16
      // Predicated region
      $region37: #{tpu_custom_call.1} parent=5 // pred_check
        %p462 = pneg %p461
      $region38: #{tpu_custom_call.1} parent=5 // pred_check_branch
        %464 = sbr.rel (%p462) target = $region40
      $region39: #{tpu_custom_call.1} parent=5 // pred_region
        // Predicated region
        $region41: #{tpu_custom_call.1} parent=39 // pred_check
          %p465 = pneg %p68
        $region42: #{tpu_custom_call.1} parent=39 // pred_check_branch
          %467 = sbr.rel (%p465) target = $region44
        $region43: #{tpu_custom_call.1} parent=39 // pred_region
          %p468 = scmp.eq.s32.totalorder %s31, 0
          %s469 = scalar_select %p468, %s32, 0
          %p470 = scmp.lt.s32.totalorder %s30, 1
          %s471 = scalar_select %p470, %s30, 1
          %p472 = scmp.lt.s32.totalorder %s469, 1
          %s473 = scalar_select %p472, %s469, 1
          %s474 = smul.addr %s471, 2
          %s475 = sadd.s32 %s473, %s474
          %s476 = smul.addr %s475, 4
          %s477 = scalar_lea.vmem %s0, %s476
          %p478 = scmp.eq.s32.totalorder %s31, 0
          %s479 = scalar_select %p478, %s32, 0
        $region44: #{tpu_custom_call.1} parent=39 // pred_fallthru
          _
        // Predicated region
        $region45: #{tpu_custom_call.1} parent=39 // pred_check
          %p480 = pneg %p100
        $region46: #{tpu_custom_call.1} parent=39 // pred_check_branch
          %482 = sbr.rel (%p480) target = $region48
        $region47: #{tpu_custom_call.1} parent=39 // pred_region
          %p483 = scmp.eq.s32.totalorder %s31, 1
          %s484 = scalar_select %p483, %s32, 0
          %p485 = scmp.lt.s32.totalorder %s30, 1
          %s486 = scalar_select %p485, %s30, 1
          %p487 = scmp.lt.s32.totalorder %s484, 1
          %s488 = scalar_select %p487, %s484, 1
          %s489 = smul.addr %s486, 2
          %s490 = sadd.s32 %s488, %s489
          %s491 = smul.addr %s490, 4
          %s492 = scalar_lea.vmem %s1, %s491
          %p493 = scmp.eq.s32.totalorder %s31, 1
          %s494 = scalar_select %p493, %s32, 0
        $region48: #{tpu_custom_call.1} parent=39 // pred_fallthru
          _
        // Predicated region
        $region49: #{tpu_custom_call.1} parent=39 // pred_check
          %p495 = pneg %p132
        $region50: #{tpu_custom_call.1} parent=39 // pred_check_branch
          %497 = sbr.rel (%p495) target = $region52
        $region51: #{tpu_custom_call.1} parent=39 // pred_region
          %p498 = scmp.eq.s32.totalorder %s31, 2
          %s499 = scalar_select %p498, %s32, 0
          %p500 = scmp.lt.s32.totalorder %s30, 1
          %s501 = scalar_select %p500, %s30, 1
          %p502 = scmp.lt.s32.totalorder %s499, 1
          %s503 = scalar_select %p502, %s499, 1
          %s504 = smul.addr %s501, 2
          %s505 = sadd.s32 %s503, %s504
          %s506 = smul.addr %s505, 4
          %s507 = scalar_lea.vmem %s2, %s506
          %p508 = scmp.eq.s32.totalorder %s31, 2
          %s509 = scalar_select %p508, %s32, 0
        $region52: #{tpu_custom_call.1} parent=39 // pred_fallthru
          _
        // Predicated region
        $region53: #{tpu_custom_call.1} parent=39 // pred_check
          %p510 = pneg %p164
        $region54: #{tpu_custom_call.1} parent=39 // pred_check_branch
          %512 = sbr.rel (%p510) target = $region56
        $region55: #{tpu_custom_call.1} parent=39 // pred_region
          %p513 = scmp.eq.s32.totalorder %s31, 3
          %s514 = scalar_select %p513, %s32, 0
          %p515 = scmp.lt.s32.totalorder %s30, 1
          %s516 = scalar_select %p515, %s30, 1
          %p517 = scmp.lt.s32.totalorder %s514, 1
          %s518 = scalar_select %p517, %s514, 1
          %s519 = smul.addr %s516, 2
          %s520 = sadd.s32 %s518, %s519
          %s521 = smul.addr %s520, 4
          %s522 = scalar_lea.vmem %s3, %s521
          %p523 = scmp.eq.s32.totalorder %s31, 3
          %s524 = scalar_select %p523, %s32, 0
        $region56: #{tpu_custom_call.1} parent=39 // pred_fallthru
          _
        // Predicated region
        $region57: #{tpu_custom_call.1} parent=39 // pred_check
          %p525 = pneg %p234
        $region58: #{tpu_custom_call.1} parent=39 // pred_check_branch
          %527 = sbr.rel (%p525) target = $region60
        $region59: #{tpu_custom_call.1} parent=39 // pred_region
          %s528 = smul.u32 16, %s32
          %p529 = scmp.lt.s32.totalorder %s31, 3
          %s530 = scalar_select %p529, %s31, 3
          %p531 = scmp.lt.s32.totalorder %s528, 31
          %s532 = scalar_select %p531, %s528, 31
          %s533 = smul.addr %s530, 32
          %s534 = sadd.s32 %s532, %s533
          %s535 = smul.addr %s534, 4
          %s536 = scalar_lea.vmem %s6, %s535
          %s537 = smul.u32 16, %s32
        $region60: #{tpu_custom_call.1} parent=39 // pred_fallthru
          _
        // Predicated region
        $region61: #{tpu_custom_call.1} parent=39 // pred_check
          %p538 = pneg %p260
        $region62: #{tpu_custom_call.1} parent=39 // pred_check_branch
          %540 = sbr.rel (%p538) target = $region64
        $region63: #{tpu_custom_call.1} parent=39 // pred_region
          %p541 = scmp.lt.s32.totalorder %s31, 3
          %s542 = scalar_select %p541, %s31, 3
          %s543 = scalar_lea.vmem %s7, %s542
        $region64: #{tpu_custom_call.1} parent=39 // pred_fallthru
          _
        // Predicated region
        $region65: #{tpu_custom_call.1} parent=39 // pred_check
          %p544 = pneg %p286
        $region66: #{tpu_custom_call.1} parent=39 // pred_check_branch
          %546 = sbr.rel (%p544) target = $region68
        $region67: #{tpu_custom_call.1} parent=39 // pred_region
          %p547 = scmp.lt.s32.totalorder %s31, 3
          %s548 = scalar_select %p547, %s31, 3
          %s549 = scalar_lea.vmem %s8, %s548
        $region68: #{tpu_custom_call.1} parent=39 // pred_fallthru
          _
        // Predicated region
        $region69: #{tpu_custom_call.1} parent=39 // pred_check
          %p550 = pneg %p312
        $region70: #{tpu_custom_call.1} parent=39 // pred_check_branch
          %552 = sbr.rel (%p550) target = $region72
        $region71: #{tpu_custom_call.1} parent=39 // pred_region
          %p553 = scmp.lt.s32.totalorder %s31, 3
          %s554 = scalar_select %p553, %s31, 3
          %s555 = scalar_lea.vmem %s9, %s554
        $region72: #{tpu_custom_call.1} parent=39 // pred_fallthru
          _
      $region40: #{tpu_custom_call.1} parent=5 // pred_fallthru
        _
      %p556 = scmp.le.s32.totalorder 1, %s23
      %p557 = scmp.lt.s32.totalorder %s23, 17
      %p558 = pnand %p556, %p557
      %p559 = pneg %p558
      // Predicated region
      $region73: #{tpu_custom_call.1} parent=5 // pred_check
        _
      $region74: #{tpu_custom_call.1} parent=5 // pred_check_branch
        %561 = sbr.rel (%p558) target = $region76
      $region75: #{tpu_custom_call.1} parent=5 // pred_region
        %s562 = ssub.s32 %s23, 1
        %p563 = scmp.eq.s32.totalorder %s34, 0
        %s564 = scalar_select %p563, %s35, 0
        %p565 = scmp.lt.s32.totalorder %s33, 1
        %s566 = scalar_select %p565, %s33, 1
        %p567 = scmp.lt.s32.totalorder %s564, 1
        %s568 = scalar_select %p567, %s564, 1
        %s569 = smul.addr %s566, 2
        %s570 = sadd.s32 %s568, %s569
        %s571 = smul.addr %s570, 4
        %s572 = scalar_lea.vmem %s0, %s571
        %p573 = pneg %p74
        %p574 = pneg %p71
        %p575 = scmp.eq.s32.totalorder %s34, 1
        %s576 = scalar_select %p575, %s35, 0
        %p577 = scmp.lt.s32.totalorder %s33, 1
        %s578 = scalar_select %p577, %s33, 1
        %p579 = scmp.lt.s32.totalorder %s576, 1
        %s580 = scalar_select %p579, %s576, 1
        %s581 = smul.addr %s578, 2
        %s582 = sadd.s32 %s580, %s581
        %s583 = smul.addr %s582, 4
        %s584 = scalar_lea.vmem %s1, %s583
        %p585 = pneg %p106
        %p586 = pneg %p103
        %p587 = scmp.eq.s32.totalorder %s34, 2
        %s588 = scalar_select %p587, %s35, 0
        %p589 = scmp.lt.s32.totalorder %s33, 1
        %s590 = scalar_select %p589, %s33, 1
        %p591 = scmp.lt.s32.totalorder %s588, 1
        %s592 = scalar_select %p591, %s588, 1
        %s593 = smul.addr %s590, 2
        %s594 = sadd.s32 %s592, %s593
        %s595 = smul.addr %s594, 4
        %s596 = scalar_lea.vmem %s2, %s595
        %p597 = pneg %p138
        %p598 = pneg %p135
        %p599 = scmp.eq.s32.totalorder %s34, 3
        %s600 = scalar_select %p599, %s35, 0
        %p601 = scmp.lt.s32.totalorder %s33, 1
        %s602 = scalar_select %p601, %s33, 1
        %p603 = scmp.lt.s32.totalorder %s600, 1
        %s604 = scalar_select %p603, %s600, 1
        %s605 = smul.addr %s602, 2
        %s606 = sadd.s32 %s604, %s605
        %s607 = smul.addr %s606, 4
        %s608 = scalar_lea.vmem %s3, %s607
        %p609 = pneg %p170
        %p610 = pneg %p167
        %p611 = pneg %p191
        %p612 = pneg %p188
        %p613 = pneg %p212
        %p614 = pneg %p209
        %s615 = smul.u32 16, %s35
        %p616 = scmp.lt.s32.totalorder %s34, 3
        %s617 = scalar_select %p616, %s34, 3
        %p618 = scmp.lt.s32.totalorder %s615, 31
        %s619 = scalar_select %p618, %s615, 31
        %s620 = smul.addr %s617, 32
        %s621 = sadd.s32 %s619, %s620
        %s622 = smul.addr %s621, 4
        %s623 = scalar_lea.vmem %s6, %s622
        %p624 = pneg %p240
        %p625 = pneg %p237
        %p626 = scmp.lt.s32.totalorder %s34, 3
        %s627 = scalar_select %p626, %s34, 3
        %s628 = scalar_lea.vmem %s7, %s627
        %p629 = pneg %p266
        %p630 = pneg %p263
        %p631 = scmp.lt.s32.totalorder %s34, 3
        %s632 = scalar_select %p631, %s34, 3
        %s633 = scalar_lea.vmem %s8, %s632
        %p634 = pneg %p292
        %p635 = pneg %p289
        %p636 = scmp.lt.s32.totalorder %s34, 3
        %s637 = scalar_select %p636, %s34, 3
        %s638 = scalar_lea.vmem %s9, %s637
        %p639 = pneg %p318
        %p640 = pneg %p315
        %p641 = pneg %p339
        %p642 = pneg %p336
        %p643 = pneg %p360
        %p644 = pneg %p357
        %p645 = pneg %p381
        %p646 = pneg %p378
        %p647 = pneg %p402
        %p648 = pneg %p399
        %p649 = pneg %p428
        %p650 = pneg %p425
        %s651 = sand.u32 %s415, 1
        %s652 = scalar_lea.sflag [#allocation5], %s651
        %s653 = sand.u32 %s415, 1
        %s654 = smul.addr %s653, 8
        %s655 = scalar_lea.vmem [#allocation4], %s654
        %p656 = scmp.eq.s32.totalorder %s34, 0
        %s657 = scalar_select %p656, %s35, 0
        %p658 = scmp.lt.s32.totalorder %s33, 1
        %s659 = scalar_select %p658, %s33, 1
        %p660 = scmp.lt.s32.totalorder %s657, 1
        %s661 = scalar_select %p660, %s657, 1
        %s662 = smul.addr %s659, 2
        %s663 = sadd.s32 %s661, %s662
        %s664 = smul.addr %s663, 4
        %s665 = scalar_lea.vmem %s0, %s664
        %p666 = scmp.eq.s32.totalorder %s34, 0
        %s667 = scalar_select %p666, %s35, 0
        %p668 = scmp.eq.s32.totalorder %s34, 1
        %s669 = scalar_select %p668, %s35, 0
        %p670 = scmp.lt.s32.totalorder %s33, 1
        %s671 = scalar_select %p670, %s33, 1
        %p672 = scmp.lt.s32.totalorder %s669, 1
        %s673 = scalar_select %p672, %s669, 1
        %s674 = smul.addr %s671, 2
        %s675 = sadd.s32 %s673, %s674
        %s676 = smul.addr %s675, 4
        %s677 = scalar_lea.vmem %s1, %s676
        %p678 = scmp.eq.s32.totalorder %s34, 1
        %s679 = scalar_select %p678, %s35, 0
        %p680 = scmp.eq.s32.totalorder %s34, 2
        %s681 = scalar_select %p680, %s35, 0
        %p682 = scmp.lt.s32.totalorder %s33, 1
        %s683 = scalar_select %p682, %s33, 1
        %p684 = scmp.lt.s32.totalorder %s681, 1
        %s685 = scalar_select %p684, %s681, 1
        %s686 = smul.addr %s683, 2
        %s687 = sadd.s32 %s685, %s686
        %s688 = smul.addr %s687, 4
        %s689 = scalar_lea.vmem %s2, %s688
        %p690 = scmp.eq.s32.totalorder %s34, 2
        %s691 = scalar_select %p690, %s35, 0
        %p692 = scmp.eq.s32.totalorder %s34, 3
        %s693 = scalar_select %p692, %s35, 0
        %p694 = scmp.lt.s32.totalorder %s33, 1
        %s695 = scalar_select %p694, %s33, 1
        %p696 = scmp.lt.s32.totalorder %s693, 1
        %s697 = scalar_select %p696, %s693, 1
        %s698 = smul.addr %s695, 2
        %s699 = sadd.s32 %s697, %s698
        %s700 = smul.addr %s699, 4
        %s701 = scalar_lea.vmem %s3, %s700
        %p702 = scmp.eq.s32.totalorder %s34, 3
        %s703 = scalar_select %p702, %s35, 0
        %s704 = smul.u32 16, %s35
        %p705 = scmp.lt.s32.totalorder %s34, 3
        %s706 = scalar_select %p705, %s34, 3
        %p707 = scmp.lt.s32.totalorder %s704, 31
        %s708 = scalar_select %p707, %s704, 31
        %s709 = smul.addr %s706, 32
        %s710 = sadd.s32 %s708, %s709
        %s711 = smul.addr %s710, 4
        %s712 = scalar_lea.vmem %s6, %s711
        %s713 = smul.u32 16, %s35
        %p714 = scmp.lt.s32.totalorder %s34, 3
        %s715 = scalar_select %p714, %s34, 3
        %s716 = scalar_lea.vmem %s7, %s715
        %p717 = scmp.lt.s32.totalorder %s34, 3
        %s718 = scalar_select %p717, %s34, 3
        %s719 = scalar_lea.vmem %s8, %s718
        %p720 = scmp.lt.s32.totalorder %s34, 3
        %s721 = scalar_select %p720, %s34, 3
        %s722 = scalar_lea.vmem %s9, %s721
        %p724 = scmp.eq.s32.totalorder %s35, 0
        // Predicated region
        $region77: #{tpu_custom_call.1} parent=75 // pred_check
          %p725 = pneg %p724
        $region78: #{tpu_custom_call.1} parent=75 // pred_check_branch
          %727 = sbr.rel (%p725) target = $region80
        $region79: #{tpu_custom_call.1} parent=75 // pred_region
          %vm728 = vcmask 261120
          %729 = vst.msk [vmem:[#allocation2] sm:$0xff] %vm728, 0.0
        $region80: #{tpu_custom_call.1} parent=75 // pred_fallthru
          _
        %v730 = vld [vmem:[%s665] sm:$0xf]
        %p731 = scmp.eq.s32.totalorder %s34, 1
        %v732 = vld [vmem:[%s677] sm:$0xf]
        %s733 = scalar_select %p731, 1, 0
        %v734 = vstv %s733
        %vm735 = vcmp.eq.s32.totalorder %v734, 1
        %v736 = vsel %vm735, %v732, %v730
        %p737 = scmp.eq.s32.totalorder %s34, 2
        %v738 = vld [vmem:[%s689] sm:$0xf]
        %s739 = scalar_select %p737, 1, 0
        %v740 = vstv %s739
        %vm741 = vcmp.eq.s32.totalorder %v740, 1
        %v742 = vsel %vm741, %v738, %v736
        %p743 = scmp.eq.s32.totalorder %s34, 3
        %v744 = vld [vmem:[%s701] sm:$0xf]
        %s745 = scalar_select %p743, 1, 0
        %v746 = vstv %s745
        %vm747 = vcmp.eq.s32.totalorder %v746, 1
        %v748 = vsel %vm747, %v744, %v742
        %v749 = vld [vmem:[#allocation2] sm:$0xff]
        %v750 = vld [vmem:[%s712] sm:$0xf]
        %v751 = vld [vmem:[%s712 + $0x4] sm:$0xf]
        %v752 = vld [vmem:[%s712 + $0x8] sm:$0xf]
        %v753 = vld [vmem:[%s712 + $0xc] sm:$0xf]
        %v754 = vld [vmem:[%s712 + $0x10] sm:$0xf]
        %v755 = vld [vmem:[%s712 + $0x14] sm:$0xf]
        %v756 = vld [vmem:[%s712 + $0x18] sm:$0xf]
        %v757 = vld [vmem:[%s712 + $0x1c] sm:$0xf]
        %v758 = vld [vmem:[%s712 + $0x20] sm:$0xf]
        %v759 = vld [vmem:[%s712 + $0x24] sm:$0xf]
        %v760 = vld [vmem:[%s712 + $0x28] sm:$0xf]
        %v761 = vld [vmem:[%s712 + $0x2c] sm:$0xf]
        %v762 = vld [vmem:[%s712 + $0x30] sm:$0xf]
        %v763 = vld [vmem:[%s712 + $0x34] sm:$0xf]
        %v764 = vld [vmem:[%s712 + $0x38] sm:$0xf]
        %v765 = vld [vmem:[%s712 + $0x3c] sm:$0xf]
        %v782 = vunpack.c.l.b16 %v750
        %v783 = vunpack.c.l.b16 %v751
        %v784 = vunpack.c.l.b16 %v752
        %v785 = vunpack.c.l.b16 %v753
        %v786 = vunpack.c.l.b16 %v754
        %v787 = vunpack.c.l.b16 %v755
        %v788 = vunpack.c.l.b16 %v756
        %v789 = vunpack.c.l.b16 %v757
        %v790 = vunpack.c.l.b16 %v758
        %v791 = vunpack.c.l.b16 %v759
        %v792 = vunpack.c.l.b16 %v760
        %v793 = vunpack.c.l.b16 %v761
        %v794 = vunpack.c.l.b16 %v762
        %v795 = vunpack.c.l.b16 %v763
        %v796 = vunpack.c.l.b16 %v764
        %v797 = vunpack.c.l.b16 %v765
        %v798 = vpack.c.b16 %v783, %v782
        %v799 = vpack.c.b16 %v785, %v784
        %v800 = vpack.c.b16 %v787, %v786
        %v801 = vpack.c.b16 %v789, %v788
        %v802 = vpack.c.b16 %v791, %v790
        %v803 = vpack.c.b16 %v793, %v792
        %v804 = vpack.c.b16 %v795, %v794
        %v805 = vpack.c.b16 %v797, %v796
        %814 = vmatprep.subr.bf16.mxu0 0
        %815 = vmatpush1.bf16.msra.mxu0 %v805
        %816 = vmatprep.subr.bf16.mxu0 0
        %817 = vmatpush1.bf16.msra.mxu0 %v804
        %818 = vmatprep.subr.bf16.mxu0 0
        %819 = vmatpush1.bf16.msra.mxu0 %v803
        %820 = vmatprep.subr.bf16.mxu0 0
        %821 = vmatpush1.bf16.msra.mxu0 %v802
        %822 = vmatprep.subr.bf16.mxu0 0
        %823 = vmatpush1.bf16.msra.mxu0 %v801
        %824 = vmatprep.subr.bf16.mxu0 0
        %825 = vmatpush1.bf16.msra.mxu0 %v800
        %826 = vmatprep.subr.bf16.mxu0 0
        %827 = vmatpush1.bf16.msra.mxu0 %v799
        %828 = vmatprep.subr.bf16.mxu0 0
        %829 = vmatpush1.bf16.msra.mxu0 %v798
        %830 = vmatprep.subr.bf16.mxu0 0
        %831 = vmatpush2.bf16.msra.mxu0 0
        %832 = vmatprep.subr.bf16.mxu0 0
        %833 = vmatpush2.bf16.msra.mxu0 0
        %834 = vmatprep.subr.bf16.mxu0 0
        %835 = vmatpush2.bf16.msra.mxu0 0
        %836 = vmatprep.subr.bf16.mxu0 0
        %837 = vmatpush2.bf16.msra.mxu0 0
        %838 = vmatprep.subr.bf16.mxu0 0
        %839 = vmatpush2.bf16.msra.mxu0 0
        %840 = vmatprep.subr.bf16.mxu0 0
        %841 = vmatpush2.bf16.msra.mxu0 0
        %842 = vmatprep.subr.bf16.mxu0 0
        %843 = vmatpush2.bf16.msra.mxu0 0
        %844 = vmatprep.subr.bf16.mxu0 0
        %845 = vmatpush2.bf16.msra.mxu0 0
        %846 = vmatprep.mubr.bf16.mxu0 0
        %847 = vmatmul.mubr.bf16.gmra.mxu0 %v748
        %v848 = vpop.f32.mrf.mxu0
        %v849 = vadd.f32 0.0, %v848
        %v850 = vpop.f32.mrf.mxu0
        %v851 = vpop.f32.mrf.mxu0
        %v852 = vpop.f32.mrf.mxu0
        %853 = vdwg.mxu0
        %v854 = vadd.f32 %v749, %v849
        %vm855 = vcmask 261120
        %856 = vst.msk [vmem:[#allocation2] sm:$0xff] %vm855, %v854
        %p857 = scmp.eq.s32.totalorder %s35, 1
        // Predicated region
        $region81: #{tpu_custom_call.1} parent=75 // pred_check
          %p858 = pneg %p857
        $region82: #{tpu_custom_call.1} parent=75 // pred_check_branch
          %860 = sbr.rel (%p858) target = $region84
        $region83: #{tpu_custom_call.1} parent=75 // pred_region
          %v861 = vld [vmem:[%s4] sm:$0xff]
          %v862 = vld [vmem:[%s4 + $0x8] sm:$0xff]
          %v863 = vld [vmem:[%s4 + $0x10] sm:$0xff]
          %v864 = vld [vmem:[%s4 + $0x18] sm:$0xff]
          %v865 = vld [vmem:[%s5] sm:$0xf]
          %v866 = vld [vmem:[#allocation2] sm:$0xff]
          %v867 = vld [vmem:[%s716] sm:$0x1]
          %v869 = vlaneseq
          %v870 = vshrl.u32 %v869, 7
          %v871 = vsub.s32 0, %v870
          %v872 = vrot.slane %v867, %v871
          %v874 = vadd.f32 %v866, %v872
          %v875 = vld [vmem:[%s719] sm:$0x1]
          %v876 = vld [vmem:[%s722] sm:$0x1]
          %v878 = vsel %vm855, %v874, 0
          %880 = vmatprep.subr.mxu0 0.0
          %881 = vmatpush1.msra.mxu0 0.0
          %882 = vmatprep.subr.mxu0 0.0
          %883 = vmatpush1.msra.mxu0 0.0
          %884 = vmatprep.subr.mxu0 0.0
          %885 = vmatpush1.msra.mxu0 0.0
          %886 = vmatprep.subr.mxu0 0.0
          %887 = vmatpush1.msra.mxu0 0.0
          %888 = vmatprep.subr.mxu0 0.0
          %889 = vmatpush1.msra.mxu0 0.0
          %890 = vmatprep.subr.mxu0 0.0
          %891 = vmatpush1.msra.mxu0 0.0
          %892 = vmatprep.subr.mxu0 0.0
          %893 = vmatpush1.msra.mxu0 0.0
          %894 = vmatprep.subr.mxu0 0.0
          %895 = vmatpush1.msra.mxu0 0.0
          %896 = vmatprep.subr.mxu0 0.0
          %897 = vmatpush1.msra.mxu0 0.0
          %898 = vmatprep.subr.mxu0 0.0
          %899 = vmatpush1.msra.mxu0 0.0
          %900 = vmatprep.subr.mxu0 0.0
          %901 = vmatpush1.msra.mxu0 0.0
          %902 = vmatprep.subr.mxu0 0.0
          %903 = vmatpush1.msra.mxu0 0.0
          %904 = vmatprep.subr.mxu0 0.0
          %905 = vmatpush1.msra.mxu0 %v864
          %906 = vmatprep.subr.mxu0 0.0
          %907 = vmatpush1.msra.mxu0 %v863
          %908 = vmatprep.subr.mxu0 0.0
          %909 = vmatpush1.msra.mxu0 %v862
          %910 = vmatprep.subr.mxu0 0.0
          %911 = vmatpush1.msra.mxu0 %v861
          %912 = vmatprep.subr.mxu0 0.0
          %913 = vmatpush2.msra.mxu0 0.0
          %914 = vmatprep.subr.mxu0 0.0
          %915 = vmatpush2.msra.mxu0 0.0
          %916 = vmatprep.subr.mxu0 0.0
          %917 = vmatpush2.msra.mxu0 0.0
          %918 = vmatprep.subr.mxu0 0.0
          %919 = vmatpush2.msra.mxu0 0.0
          %920 = vmatprep.subr.mxu0 0.0
          %921 = vmatpush2.msra.mxu0 0.0
          %922 = vmatprep.subr.mxu0 0.0
          %923 = vmatpush2.msra.mxu0 0.0
          %924 = vmatprep.subr.mxu0 0.0
          %925 = vmatpush2.msra.mxu0 0.0
          %926 = vmatprep.subr.mxu0 0.0
          %927 = vmatpush2.msra.mxu0 0.0
          %928 = vmatprep.subr.mxu0 0.0
          %929 = vmatpush2.msra.mxu0 0.0
          %930 = vmatprep.subr.mxu0 0.0
          %931 = vmatpush2.msra.mxu0 0.0
          %932 = vmatprep.subr.mxu0 0.0
          %933 = vmatpush2.msra.mxu0 0.0
          %934 = vmatprep.subr.mxu0 0.0
          %935 = vmatpush2.msra.mxu0 0.0
          %936 = vmatprep.subr.mxu0 0.0
          %937 = vmatpush2.msra.mxu0 0.0
          %938 = vmatprep.subr.mxu0 0.0
          %939 = vmatpush2.msra.mxu0 0.0
          %940 = vmatprep.subr.mxu0 0.0
          %941 = vmatpush2.msra.mxu0 0.0
          %942 = vmatprep.subr.mxu0 0.0
          %943 = vmatpush2.msra.mxu0 0.0
          %944 = vmatprep.mubr.f32.mxu0 0.0
          %945 = vmatmul.mubr.f32.gmra.mxu0 %v878
          %v946 = vpop.f32.mrf.mxu0
          %v947 = vadd.f32 0.0, %v946
          %v948 = vpop.f32.mrf.mxu0
          %949 = vdwg.mxu0
          %v950 = vrcp.pop 8.0
          %v951 = vmul.f32 %v947, %v950
          %vm952 = vcmask 31744
          %v954 = vsel %vm952, %v951, 0
          %vm956 = vcmask 1043456
          %v958 = vsel %vm956, %v865, 0
          %960 = vmatprep.subr.mxu0 0.0
          %961 = vmatpush1.msra.mxu0 0.0
          %962 = vmatprep.subr.mxu0 0.0
          %963 = vmatpush1.msra.mxu0 0.0
          %964 = vmatprep.subr.mxu0 0.0
          %965 = vmatpush1.msra.mxu0 0.0
          %966 = vmatprep.subr.mxu0 0.0
          %967 = vmatpush1.msra.mxu0 0.0
          %968 = vmatprep.subr.mxu0 0.0
          %969 = vmatpush1.msra.mxu0 0.0
          %970 = vmatprep.subr.mxu0 0.0
          %971 = vmatpush1.msra.mxu0 0.0
          %972 = vmatprep.subr.mxu0 0.0
          %973 = vmatpush1.msra.mxu0 0.0
          %974 = vmatprep.subr.mxu0 0.0
          %975 = vmatpush1.msra.mxu0 0.0
          %976 = vmatprep.subr.mxu0 0.0
          %977 = vmatpush1.msra.mxu0 0.0
          %978 = vmatprep.subr.mxu0 0.0
          %979 = vmatpush1.msra.mxu0 0.0
          %980 = vmatprep.subr.mxu0 0.0
          %981 = vmatpush1.msra.mxu0 0.0
          %982 = vmatprep.subr.mxu0 0.0
          %983 = vmatpush1.msra.mxu0 0.0
          %984 = vmatprep.subr.mxu0 0.0
          %985 = vmatpush1.msra.mxu0 0.0
          %986 = vmatprep.subr.mxu0 0.0
          %987 = vmatpush1.msra.mxu0 0.0
          %988 = vmatprep.subr.mxu0 0.0
          %989 = vmatpush1.msra.mxu0 0.0
          %990 = vmatprep.subr.mxu0 0.0
          %991 = vmatpush1.msra.mxu0 %v958
          %992 = vmatprep.subr.mxu0 0.0
          %993 = vmatpush2.msra.mxu0 0.0
          %994 = vmatprep.subr.mxu0 0.0
          %995 = vmatpush2.msra.mxu0 0.0
          %996 = vmatprep.subr.mxu0 0.0
          %997 = vmatpush2.msra.mxu0 0.0
          %998 = vmatprep.subr.mxu0 0.0
          %999 = vmatpush2.msra.mxu0 0.0
          %1000 = vmatprep.subr.mxu0 0.0
          %1001 = vmatpush2.msra.mxu0 0.0
          %1002 = vmatprep.subr.mxu0 0.0
          %1003 = vmatpush2.msra.mxu0 0.0
          %1004 = vmatprep.subr.mxu0 0.0
          %1005 = vmatpush2.msra.mxu0 0.0
          %1006 = vmatprep.subr.mxu0 0.0
          %1007 = vmatpush2.msra.mxu0 0.0
          %1008 = vmatprep.subr.mxu0 0.0
          %1009 = vmatpush2.msra.mxu0 0.0
          %1010 = vmatprep.subr.mxu0 0.0
          %1011 = vmatpush2.msra.mxu0 0.0
          %1012 = vmatprep.subr.mxu0 0.0
          %1013 = vmatpush2.msra.mxu0 0.0
          %1014 = vmatprep.subr.mxu0 0.0
          %1015 = vmatpush2.msra.mxu0 0.0
          %1016 = vmatprep.subr.mxu0 0.0
          %1017 = vmatpush2.msra.mxu0 0.0
          %1018 = vmatprep.subr.mxu0 0.0
          %1019 = vmatpush2.msra.mxu0 0.0
          %1020 = vmatprep.subr.mxu0 0.0
          %1021 = vmatpush2.msra.mxu0 0.0
          %1022 = vmatprep.subr.mxu0 0.0
          %1023 = vmatpush2.msra.mxu0 0.0
          %1024 = vmatprep.mubr.f32.mxu0 0.0
          %1025 = vmatmul.mubr.f32.gmra.mxu0 %v954
          %v1026 = vpop.f32.mrf.mxu0
          %v1027 = vadd.f32 0.0, %v1026
          %v1028 = vpop.f32.mrf.mxu0
          %1029 = vdwg.mxu0
          %v1030 = vsub.f32 %v874, %v1027
          %v1031 = vmul.f32 %v1030, %v1030
          %v1033 = vsel %vm855, %v1031, 0
          %1035 = vmatprep.subr.mxu0 0.0
          %1036 = vmatpush1.msra.mxu0 0.0
          %1037 = vmatprep.subr.mxu0 0.0
          %1038 = vmatpush1.msra.mxu0 0.0
          %1039 = vmatprep.subr.mxu0 0.0
          %1040 = vmatpush1.msra.mxu0 0.0
          %1041 = vmatprep.subr.mxu0 0.0
          %1042 = vmatpush1.msra.mxu0 0.0
          %1043 = vmatprep.subr.mxu0 0.0
          %1044 = vmatpush1.msra.mxu0 0.0
          %1045 = vmatprep.subr.mxu0 0.0
          %1046 = vmatpush1.msra.mxu0 0.0
          %1047 = vmatprep.subr.mxu0 0.0
          %1048 = vmatpush1.msra.mxu0 0.0
          %1049 = vmatprep.subr.mxu0 0.0
          %1050 = vmatpush1.msra.mxu0 0.0
          %1051 = vmatprep.subr.mxu0 0.0
          %1052 = vmatpush1.msra.mxu0 0.0
          %1053 = vmatprep.subr.mxu0 0.0
          %1054 = vmatpush1.msra.mxu0 0.0
          %1055 = vmatprep.subr.mxu0 0.0
          %1056 = vmatpush1.msra.mxu0 0.0
          %1057 = vmatprep.subr.mxu0 0.0
          %1058 = vmatpush1.msra.mxu0 0.0
          %1059 = vmatprep.subr.mxu0 0.0
          %1060 = vmatpush1.msra.mxu0 %v864
          %1061 = vmatprep.subr.mxu0 0.0
          %1062 = vmatpush1.msra.mxu0 %v863
          %1063 = vmatprep.subr.mxu0 0.0
          %1064 = vmatpush1.msra.mxu0 %v862
          %1065 = vmatprep.subr.mxu0 0.0
          %1066 = vmatpush1.msra.mxu0 %v861
          %1067 = vmatprep.subr.mxu0 0.0
          %1068 = vmatpush2.msra.mxu0 0.0
          %1069 = vmatprep.subr.mxu0 0.0
          %1070 = vmatpush2.msra.mxu0 0.0
          %1071 = vmatprep.subr.mxu0 0.0
          %1072 = vmatpush2.msra.mxu0 0.0
          %1073 = vmatprep.subr.mxu0 0.0
          %1074 = vmatpush2.msra.mxu0 0.0
          %1075 = vmatprep.subr.mxu0 0.0
          %1076 = vmatpush2.msra.mxu0 0.0
          %1077 = vmatprep.subr.mxu0 0.0
          %1078 = vmatpush2.msra.mxu0 0.0
          %1079 = vmatprep.subr.mxu0 0.0
          %1080 = vmatpush2.msra.mxu0 0.0
          %1081 = vmatprep.subr.mxu0 0.0
          %1082 = vmatpush2.msra.mxu0 0.0
          %1083 = vmatprep.subr.mxu0 0.0
          %1084 = vmatpush2.msra.mxu0 0.0
          %1085 = vmatprep.subr.mxu0 0.0
          %1086 = vmatpush2.msra.mxu0 0.0
          %1087 = vmatprep.subr.mxu0 0.0
          %1088 = vmatpush2.msra.mxu0 0.0
          %1089 = vmatprep.subr.mxu0 0.0
          %1090 = vmatpush2.msra.mxu0 0.0
          %1091 = vmatprep.subr.mxu0 0.0
          %1092 = vmatpush2.msra.mxu0 0.0
          %1093 = vmatprep.subr.mxu0 0.0
          %1094 = vmatpush2.msra.mxu0 0.0
          %1095 = vmatprep.subr.mxu0 0.0
          %1096 = vmatpush2.msra.mxu0 0.0
          %1097 = vmatprep.subr.mxu0 0.0
          %1098 = vmatpush2.msra.mxu0 0.0
          %1099 = vmatprep.mubr.f32.mxu0 0.0
          %1100 = vmatmul.mubr.f32.gmra.mxu0 %v1033
          %v1101 = vpop.f32.mrf.mxu0
          %v1102 = vadd.f32 0.0, %v1101
          %v1103 = vpop.f32.mrf.mxu0
          %1104 = vdwg.mxu0
          %v1105 = vmul.f32 %v1102, %v950
          %v1106 = vadd.f32 %v1105, 1e-05
          %v1107 = vrsqrt.pop %v1106
          %v1109 = vsel %vm952, %v1107, 0
          %1111 = vmatprep.subr.mxu0 0.0
          %1112 = vmatpush1.msra.mxu0 0.0
          %1113 = vmatprep.subr.mxu0 0.0
          %1114 = vmatpush1.msra.mxu0 0.0
          %1115 = vmatprep.subr.mxu0 0.0
          %1116 = vmatpush1.msra.mxu0 0.0
          %1117 = vmatprep.subr.mxu0 0.0
          %1118 = vmatpush1.msra.mxu0 0.0
          %1119 = vmatprep.subr.mxu0 0.0
          %1120 = vmatpush1.msra.mxu0 0.0
          %1121 = vmatprep.subr.mxu0 0.0
          %1122 = vmatpush1.msra.mxu0 0.0
          %1123 = vmatprep.subr.mxu0 0.0
          %1124 = vmatpush1.msra.mxu0 0.0
          %1125 = vmatprep.subr.mxu0 0.0
          %1126 = vmatpush1.msra.mxu0 0.0
          %1127 = vmatprep.subr.mxu0 0.0
          %1128 = vmatpush1.msra.mxu0 0.0
          %1129 = vmatprep.subr.mxu0 0.0
          %1130 = vmatpush1.msra.mxu0 0.0
          %1131 = vmatprep.subr.mxu0 0.0
          %1132 = vmatpush1.msra.mxu0 0.0
          %1133 = vmatprep.subr.mxu0 0.0
          %1134 = vmatpush1.msra.mxu0 0.0
          %1135 = vmatprep.subr.mxu0 0.0
          %1136 = vmatpush1.msra.mxu0 0.0
          %1137 = vmatprep.subr.mxu0 0.0
          %1138 = vmatpush1.msra.mxu0 0.0
          %1139 = vmatprep.subr.mxu0 0.0
          %1140 = vmatpush1.msra.mxu0 0.0
          %1141 = vmatprep.subr.mxu0 0.0
          %1142 = vmatpush1.msra.mxu0 %v958
          %1143 = vmatprep.subr.mxu0 0.0
          %1144 = vmatpush2.msra.mxu0 0.0
          %1145 = vmatprep.subr.mxu0 0.0
          %1146 = vmatpush2.msra.mxu0 0.0
          %1147 = vmatprep.subr.mxu0 0.0
          %1148 = vmatpush2.msra.mxu0 0.0
          %1149 = vmatprep.subr.mxu0 0.0
          %1150 = vmatpush2.msra.mxu0 0.0
          %1151 = vmatprep.subr.mxu0 0.0
          %1152 = vmatpush2.msra.mxu0 0.0
          %1153 = vmatprep.subr.mxu0 0.0
          %1154 = vmatpush2.msra.mxu0 0.0
          %1155 = vmatprep.subr.mxu0 0.0
          %1156 = vmatpush2.msra.mxu0 0.0
          %1157 = vmatprep.subr.mxu0 0.0
          %1158 = vmatpush2.msra.mxu0 0.0
          %1159 = vmatprep.subr.mxu0 0.0
          %1160 = vmatpush2.msra.mxu0 0.0
          %1161 = vmatprep.subr.mxu0 0.0
          %1162 = vmatpush2.msra.mxu0 0.0
          %1163 = vmatprep.subr.mxu0 0.0
          %1164 = vmatpush2.msra.mxu0 0.0
          %1165 = vmatprep.subr.mxu0 0.0
          %1166 = vmatpush2.msra.mxu0 0.0
          %1167 = vmatprep.subr.mxu0 0.0
          %1168 = vmatpush2.msra.mxu0 0.0
          %1169 = vmatprep.subr.mxu0 0.0
          %1170 = vmatpush2.msra.mxu0 0.0
          %1171 = vmatprep.subr.mxu0 0.0
          %1172 = vmatpush2.msra.mxu0 0.0
          %1173 = vmatprep.subr.mxu0 0.0
          %1174 = vmatpush2.msra.mxu0 0.0
          %1175 = vmatprep.mubr.f32.mxu0 0.0
          %1176 = vmatmul.mubr.f32.gmra.mxu0 %v1109
          %v1177 = vpop.f32.mrf.mxu0
          %v1178 = vadd.f32 0.0, %v1177
          %v1179 = vpop.f32.mrf.mxu0
          %1180 = vdwg.mxu0
          %v1181 = vmul.f32 %v1030, %v1178
          %v1183 = vlaneseq
          %v1184 = vshrl.u32 %v1183, 7
          %v1185 = vsub.s32 0, %v1184
          %v1186 = vrot.slane %v875, %v1185
          %v1188 = vmul.f32 %v1181, %v1186
          %v1190 = vlaneseq
          %v1191 = vshrl.u32 %v1190, 7
          %v1192 = vsub.s32 0, %v1191
          %v1193 = vrot.slane %v876, %v1192
          %v1195 = vadd.f32 %v1188, %v1193
          %v1196 = vmax.f32 %v1195, 0.0
          %p1197 = scmp.eq.s32.totalorder %s34, 0
          // Predicated region
          $region85: #{tpu_custom_call.1} parent=83 // pred_check
            %p1198 = pneg %p1197
          $region86: #{tpu_custom_call.1} parent=83 // pred_check_branch
            %1200 = sbr.rel (%p1198) target = $region88
          $region87: #{tpu_custom_call.1} parent=83 // pred_region
            %1201 = vst.msk [vmem:[#allocation3] sm:$0xff] %vm855, %v1196
          $region88: #{tpu_custom_call.1} parent=83 // pred_fallthru
            _
          %p1202 = scmp.gt.s32.totalorder %s34, 0
          // Predicated region
          $region89: #{tpu_custom_call.1} parent=83 // pred_check
            %p1203 = pneg %p1202
          $region90: #{tpu_custom_call.1} parent=83 // pred_check_branch
            %1205 = sbr.rel (%p1203) target = $region92
          $region91: #{tpu_custom_call.1} parent=83 // pred_region
            %v1206 = vld [vmem:[#allocation3] sm:$0xff]
            %v1207 = vmax.f32 %v1206, %v1196
            %1208 = vst.msk [vmem:[#allocation3] sm:$0xff] %vm855, %v1207
          $region92: #{tpu_custom_call.1} parent=83 // pred_fallthru
            _
          // Predicated region
          $region93: #{tpu_custom_call.1} parent=83 // pred_check
            %p1209 = pneg %p743
          $region94: #{tpu_custom_call.1} parent=83 // pred_check_branch
            %1211 = sbr.rel (%p1209) target = $region96
          $region95: #{tpu_custom_call.1} parent=83 // pred_region
            %v1212 = vld [vmem:[#allocation3] sm:$0xff]
            %v1213 = vpack.c.bf16 %v1212, %v1212
            %v1214 = vld [vmem:[%s10] sm:$0xf]
            %v1215 = vld [vmem:[%s10 + $0x4] sm:$0xf]
            %v1216 = vld [vmem:[%s10 + $0x8] sm:$0xf]
            %v1217 = vld [vmem:[%s10 + $0xc] sm:$0xf]
            %v1218 = vld [vmem:[%s11] sm:$0x1]
            %v1220 = vlaneseq
            %v1221 = vshrl.u32 %v1220, 7
            %v1222 = vsub.s32 0, %v1221
            %v1223 = vrot.slane %v1218, %v1222
            %v1229 = vunpack.c.l.b16 %v1214
            %v1230 = vunpack.c.l.b16 %v1215
            %v1231 = vunpack.c.l.b16 %v1216
            %v1232 = vunpack.c.l.b16 %v1217
            %v1233 = vpack.c.b16 %v1230, %v1229
            %v1234 = vpack.c.b16 %v1232, %v1231
            %v1238 = vsel %vm855, %v1213, 0
            %1240 = vmatprep.subr.bf16.mxu0 0
            %1241 = vmatpush1.bf16.msra.mxu0 0
            %1242 = vmatprep.subr.bf16.mxu0 0
            %1243 = vmatpush1.bf16.msra.mxu0 0
            %1244 = vmatprep.subr.bf16.mxu0 0
            %1245 = vmatpush1.bf16.msra.mxu0 0
            %1246 = vmatprep.subr.bf16.mxu0 0
            %1247 = vmatpush1.bf16.msra.mxu0 0
            %1248 = vmatprep.subr.bf16.mxu0 0
            %1249 = vmatpush1.bf16.msra.mxu0 0
            %1250 = vmatprep.subr.bf16.mxu0 0
            %1251 = vmatpush1.bf16.msra.mxu0 0
            %1252 = vmatprep.subr.bf16.mxu0 0
            %1253 = vmatpush1.bf16.msra.mxu0 %v1234
            %1254 = vmatprep.subr.bf16.mxu0 0
            %1255 = vmatpush1.bf16.msra.mxu0 %v1233
            %1256 = vmatprep.subr.bf16.mxu0 0
            %1257 = vmatpush2.bf16.msra.mxu0 0
            %1258 = vmatprep.subr.bf16.mxu0 0
            %1259 = vmatpush2.bf16.msra.mxu0 0
            %1260 = vmatprep.subr.bf16.mxu0 0
            %1261 = vmatpush2.bf16.msra.mxu0 0
            %1262 = vmatprep.subr.bf16.mxu0 0
            %1263 = vmatpush2.bf16.msra.mxu0 0
            %1264 = vmatprep.subr.bf16.mxu0 0
            %1265 = vmatpush2.bf16.msra.mxu0 0
            %1266 = vmatprep.subr.bf16.mxu0 0
            %1267 = vmatpush2.bf16.msra.mxu0 0
            %1268 = vmatprep.subr.bf16.mxu0 0
            %1269 = vmatpush2.bf16.msra.mxu0 0
            %1270 = vmatprep.subr.bf16.mxu0 0
            %1271 = vmatpush2.bf16.msra.mxu0 0
            %1272 = vmatprep.mubr.bf16.mxu0 0
            %1273 = vmatmul.mubr.bf16.gmra.mxu0 %v1238
            %v1274 = vpop.f32.mrf.mxu0
            %v1275 = vadd.f32 %v1223, %v1274
            %v1276 = vpop.f32.mrf.mxu0
            %v1277 = vpop.f32.mrf.mxu0
            %v1278 = vpop.f32.mrf.mxu0
            %1279 = vdwg.mxu0
            %v1280 = vld [vmem:[%s12] sm:$0x1]
            %v1281 = vld [vmem:[%s13] sm:$0x1]
            %v1283 = vsel %vm855, %v1275, 0
            %1285 = vmatprep.subr.mxu0 0.0
            %1286 = vmatpush1.msra.mxu0 0.0
            %1287 = vmatprep.subr.mxu0 0.0
            %1288 = vmatpush1.msra.mxu0 0.0
            %1289 = vmatprep.subr.mxu0 0.0
            %1290 = vmatpush1.msra.mxu0 0.0
            %1291 = vmatprep.subr.mxu0 0.0
            %1292 = vmatpush1.msra.mxu0 0.0
            %1293 = vmatprep.subr.mxu0 0.0
            %1294 = vmatpush1.msra.mxu0 0.0
            %1295 = vmatprep.subr.mxu0 0.0
            %1296 = vmatpush1.msra.mxu0 0.0
            %1297 = vmatprep.subr.mxu0 0.0
            %1298 = vmatpush1.msra.mxu0 0.0
            %1299 = vmatprep.subr.mxu0 0.0
            %1300 = vmatpush1.msra.mxu0 0.0
            %1301 = vmatprep.subr.mxu0 0.0
            %1302 = vmatpush1.msra.mxu0 0.0
            %1303 = vmatprep.subr.mxu0 0.0
            %1304 = vmatpush1.msra.mxu0 0.0
            %1305 = vmatprep.subr.mxu0 0.0
            %1306 = vmatpush1.msra.mxu0 0.0
            %1307 = vmatprep.subr.mxu0 0.0
            %1308 = vmatpush1.msra.mxu0 0.0
            %1309 = vmatprep.subr.mxu0 0.0
            %1310 = vmatpush1.msra.mxu0 %v864
            %1311 = vmatprep.subr.mxu0 0.0
            %1312 = vmatpush1.msra.mxu0 %v863
            %1313 = vmatprep.subr.mxu0 0.0
            %1314 = vmatpush1.msra.mxu0 %v862
            %1315 = vmatprep.subr.mxu0 0.0
            %1316 = vmatpush1.msra.mxu0 %v861
            %1317 = vmatprep.subr.mxu0 0.0
            %1318 = vmatpush2.msra.mxu0 0.0
            %1319 = vmatprep.subr.mxu0 0.0
            %1320 = vmatpush2.msra.mxu0 0.0
            %1321 = vmatprep.subr.mxu0 0.0
            %1322 = vmatpush2.msra.mxu0 0.0
            %1323 = vmatprep.subr.mxu0 0.0
            %1324 = vmatpush2.msra.mxu0 0.0
            %1325 = vmatprep.subr.mxu0 0.0
            %1326 = vmatpush2.msra.mxu0 0.0
            %1327 = vmatprep.subr.mxu0 0.0
            %1328 = vmatpush2.msra.mxu0 0.0
            %1329 = vmatprep.subr.mxu0 0.0
            %1330 = vmatpush2.msra.mxu0 0.0
            %1331 = vmatprep.subr.mxu0 0.0
            %1332 = vmatpush2.msra.mxu0 0.0
            %1333 = vmatprep.subr.mxu0 0.0
            %1334 = vmatpush2.msra.mxu0 0.0
            %1335 = vmatprep.subr.mxu0 0.0
            %1336 = vmatpush2.msra.mxu0 0.0
            %1337 = vmatprep.subr.mxu0 0.0
            %1338 = vmatpush2.msra.mxu0 0.0
            %1339 = vmatprep.subr.mxu0 0.0
            %1340 = vmatpush2.msra.mxu0 0.0
            %1341 = vmatprep.subr.mxu0 0.0
            %1342 = vmatpush2.msra.mxu0 0.0
            %1343 = vmatprep.subr.mxu0 0.0
            %1344 = vmatpush2.msra.mxu0 0.0
            %1345 = vmatprep.subr.mxu0 0.0
            %1346 = vmatpush2.msra.mxu0 0.0
            %1347 = vmatprep.subr.mxu0 0.0
            %1348 = vmatpush2.msra.mxu0 0.0
            %1349 = vmatprep.mubr.f32.mxu0 0.0
            %1350 = vmatmul.mubr.f32.gmra.mxu0 %v1283
            %v1351 = vpop.f32.mrf.mxu0
            %v1352 = vadd.f32 0.0, %v1351
            %v1353 = vpop.f32.mrf.mxu0
            %1354 = vdwg.mxu0
            %v1355 = vmul.f32 %v1352, %v950
            %v1357 = vsel %vm952, %v1355, 0
            %1359 = vmatprep.subr.mxu0 0.0
            %1360 = vmatpush1.msra.mxu0 0.0
            %1361 = vmatprep.subr.mxu0 0.0
            %1362 = vmatpush1.msra.mxu0 0.0
            %1363 = vmatprep.subr.mxu0 0.0
            %1364 = vmatpush1.msra.mxu0 0.0
            %1365 = vmatprep.subr.mxu0 0.0
            %1366 = vmatpush1.msra.mxu0 0.0
            %1367 = vmatprep.subr.mxu0 0.0
            %1368 = vmatpush1.msra.mxu0 0.0
            %1369 = vmatprep.subr.mxu0 0.0
            %1370 = vmatpush1.msra.mxu0 0.0
            %1371 = vmatprep.subr.mxu0 0.0
            %1372 = vmatpush1.msra.mxu0 0.0
            %1373 = vmatprep.subr.mxu0 0.0
            %1374 = vmatpush1.msra.mxu0 0.0
            %1375 = vmatprep.subr.mxu0 0.0
            %1376 = vmatpush1.msra.mxu0 0.0
            %1377 = vmatprep.subr.mxu0 0.0
            %1378 = vmatpush1.msra.mxu0 0.0
            %1379 = vmatprep.subr.mxu0 0.0
            %1380 = vmatpush1.msra.mxu0 0.0
            %1381 = vmatprep.subr.mxu0 0.0
            %1382 = vmatpush1.msra.mxu0 0.0
            %1383 = vmatprep.subr.mxu0 0.0
            %1384 = vmatpush1.msra.mxu0 0.0
            %1385 = vmatprep.subr.mxu0 0.0
            %1386 = vmatpush1.msra.mxu0 0.0
            %1387 = vmatprep.subr.mxu0 0.0
            %1388 = vmatpush1.msra.mxu0 0.0
            %1389 = vmatprep.subr.mxu0 0.0
            %1390 = vmatpush1.msra.mxu0 %v958
            %1391 = vmatprep.subr.mxu0 0.0
            %1392 = vmatpush2.msra.mxu0 0.0
            %1393 = vmatprep.subr.mxu0 0.0
            %1394 = vmatpush2.msra.mxu0 0.0
            %1395 = vmatprep.subr.mxu0 0.0
            %1396 = vmatpush2.msra.mxu0 0.0
            %1397 = vmatprep.subr.mxu0 0.0
            %1398 = vmatpush2.msra.mxu0 0.0
            %1399 = vmatprep.subr.mxu0 0.0
            %1400 = vmatpush2.msra.mxu0 0.0
            %1401 = vmatprep.subr.mxu0 0.0
            %1402 = vmatpush2.msra.mxu0 0.0
            %1403 = vmatprep.subr.mxu0 0.0
            %1404 = vmatpush2.msra.mxu0 0.0
            %1405 = vmatprep.subr.mxu0 0.0
            %1406 = vmatpush2.msra.mxu0 0.0
            %1407 = vmatprep.subr.mxu0 0.0
            %1408 = vmatpush2.msra.mxu0 0.0
            %1409 = vmatprep.subr.mxu0 0.0
            %1410 = vmatpush2.msra.mxu0 0.0
            %1411 = vmatprep.subr.mxu0 0.0
            %1412 = vmatpush2.msra.mxu0 0.0
            %1413 = vmatprep.subr.mxu0 0.0
            %1414 = vmatpush2.msra.mxu0 0.0
            %1415 = vmatprep.subr.mxu0 0.0
            %1416 = vmatpush2.msra.mxu0 0.0
            %1417 = vmatprep.subr.mxu0 0.0
            %1418 = vmatpush2.msra.mxu0 0.0
            %1419 = vmatprep.subr.mxu0 0.0
            %1420 = vmatpush2.msra.mxu0 0.0
            %1421 = vmatprep.subr.mxu0 0.0
            %1422 = vmatpush2.msra.mxu0 0.0
            %1423 = vmatprep.mubr.f32.mxu0 0.0
            %1424 = vmatmul.mubr.f32.gmra.mxu0 %v1357
            %v1425 = vpop.f32.mrf.mxu0
            %v1426 = vadd.f32 0.0, %v1425
            %v1427 = vpop.f32.mrf.mxu0
            %1428 = vdwg.mxu0
            %v1429 = vsub.f32 %v1275, %v1426
            %v1430 = vmul.f32 %v1429, %v1429
            %v1432 = vsel %vm855, %v1430, 0
            %1434 = vmatprep.subr.mxu0 0.0
            %1435 = vmatpush1.msra.mxu0 0.0
            %1436 = vmatprep.subr.mxu0 0.0
            %1437 = vmatpush1.msra.mxu0 0.0
            %1438 = vmatprep.subr.mxu0 0.0
            %1439 = vmatpush1.msra.mxu0 0.0
            %1440 = vmatprep.subr.mxu0 0.0
            %1441 = vmatpush1.msra.mxu0 0.0
            %1442 = vmatprep.subr.mxu0 0.0
            %1443 = vmatpush1.msra.mxu0 0.0
            %1444 = vmatprep.subr.mxu0 0.0
            %1445 = vmatpush1.msra.mxu0 0.0
            %1446 = vmatprep.subr.mxu0 0.0
            %1447 = vmatpush1.msra.mxu0 0.0
            %1448 = vmatprep.subr.mxu0 0.0
            %1449 = vmatpush1.msra.mxu0 0.0
            %1450 = vmatprep.subr.mxu0 0.0
            %1451 = vmatpush1.msra.mxu0 0.0
            %1452 = vmatprep.subr.mxu0 0.0
            %1453 = vmatpush1.msra.mxu0 0.0
            %1454 = vmatprep.subr.mxu0 0.0
            %1455 = vmatpush1.msra.mxu0 0.0
            %1456 = vmatprep.subr.mxu0 0.0
            %1457 = vmatpush1.msra.mxu0 0.0
            %1458 = vmatprep.subr.mxu0 0.0
            %1459 = vmatpush1.msra.mxu0 %v864
            %1460 = vmatprep.subr.mxu0 0.0
            %1461 = vmatpush1.msra.mxu0 %v863
            %1462 = vmatprep.subr.mxu0 0.0
            %1463 = vmatpush1.msra.mxu0 %v862
            %1464 = vmatprep.subr.mxu0 0.0
            %1465 = vmatpush1.msra.mxu0 %v861
            %1466 = vmatprep.subr.mxu0 0.0
            %1467 = vmatpush2.msra.mxu0 0.0
            %1468 = vmatprep.subr.mxu0 0.0
            %1469 = vmatpush2.msra.mxu0 0.0
            %1470 = vmatprep.subr.mxu0 0.0
            %1471 = vmatpush2.msra.mxu0 0.0
            %1472 = vmatprep.subr.mxu0 0.0
            %1473 = vmatpush2.msra.mxu0 0.0
            %1474 = vmatprep.subr.mxu0 0.0
            %1475 = vmatpush2.msra.mxu0 0.0
            %1476 = vmatprep.subr.mxu0 0.0
            %1477 = vmatpush2.msra.mxu0 0.0
            %1478 = vmatprep.subr.mxu0 0.0
            %1479 = vmatpush2.msra.mxu0 0.0
            %1480 = vmatprep.subr.mxu0 0.0
            %1481 = vmatpush2.msra.mxu0 0.0
            %1482 = vmatprep.subr.mxu0 0.0
            %1483 = vmatpush2.msra.mxu0 0.0
            %1484 = vmatprep.subr.mxu0 0.0
            %1485 = vmatpush2.msra.mxu0 0.0
            %1486 = vmatprep.subr.mxu0 0.0
            %1487 = vmatpush2.msra.mxu0 0.0
            %1488 = vmatprep.subr.mxu0 0.0
            %1489 = vmatpush2.msra.mxu0 0.0
            %1490 = vmatprep.subr.mxu0 0.0
            %1491 = vmatpush2.msra.mxu0 0.0
            %1492 = vmatprep.subr.mxu0 0.0
            %1493 = vmatpush2.msra.mxu0 0.0
            %1494 = vmatprep.subr.mxu0 0.0
            %1495 = vmatpush2.msra.mxu0 0.0
            %1496 = vmatprep.subr.mxu0 0.0
            %1497 = vmatpush2.msra.mxu0 0.0
            %1498 = vmatprep.mubr.f32.mxu0 0.0
            %1499 = vmatmul.mubr.f32.gmra.mxu0 %v1432
            %v1500 = vpop.f32.mrf.mxu0
            %v1501 = vadd.f32 0.0, %v1500
            %v1502 = vpop.f32.mrf.mxu0
            %1503 = vdwg.mxu0
            %v1504 = vmul.f32 %v1501, %v950
            %v1505 = vadd.f32 %v1504, 1e-05
            %v1506 = vrsqrt.pop %v1505
            %v1508 = vsel %vm952, %v1506, 0
            %1510 = vmatprep.subr.mxu0 0.0
            %1511 = vmatpush1.msra.mxu0 0.0
            %1512 = vmatprep.subr.mxu0 0.0
            %1513 = vmatpush1.msra.mxu0 0.0
            %1514 = vmatprep.subr.mxu0 0.0
            %1515 = vmatpush1.msra.mxu0 0.0
            %1516 = vmatprep.subr.mxu0 0.0
            %1517 = vmatpush1.msra.mxu0 0.0
            %1518 = vmatprep.subr.mxu0 0.0
            %1519 = vmatpush1.msra.mxu0 0.0
            %1520 = vmatprep.subr.mxu0 0.0
            %1521 = vmatpush1.msra.mxu0 0.0
            %1522 = vmatprep.subr.mxu0 0.0
            %1523 = vmatpush1.msra.mxu0 0.0
            %1524 = vmatprep.subr.mxu0 0.0
            %1525 = vmatpush1.msra.mxu0 0.0
            %1526 = vmatprep.subr.mxu0 0.0
            %1527 = vmatpush1.msra.mxu0 0.0
            %1528 = vmatprep.subr.mxu0 0.0
            %1529 = vmatpush1.msra.mxu0 0.0
            %1530 = vmatprep.subr.mxu0 0.0
            %1531 = vmatpush1.msra.mxu0 0.0
            %1532 = vmatprep.subr.mxu0 0.0
            %1533 = vmatpush1.msra.mxu0 0.0
            %1534 = vmatprep.subr.mxu0 0.0
            %1535 = vmatpush1.msra.mxu0 0.0
            %1536 = vmatprep.subr.mxu0 0.0
            %1537 = vmatpush1.msra.mxu0 0.0
            %1538 = vmatprep.subr.mxu0 0.0
            %1539 = vmatpush1.msra.mxu0 0.0
            %1540 = vmatprep.subr.mxu0 0.0
            %1541 = vmatpush1.msra.mxu0 %v958
            %1542 = vmatprep.subr.mxu0 0.0
            %1543 = vmatpush2.msra.mxu0 0.0
            %1544 = vmatprep.subr.mxu0 0.0
            %1545 = vmatpush2.msra.mxu0 0.0
            %1546 = vmatprep.subr.mxu0 0.0
            %1547 = vmatpush2.msra.mxu0 0.0
            %1548 = vmatprep.subr.mxu0 0.0
            %1549 = vmatpush2.msra.mxu0 0.0
            %1550 = vmatprep.subr.mxu0 0.0
            %1551 = vmatpush2.msra.mxu0 0.0
            %1552 = vmatprep.subr.mxu0 0.0
            %1553 = vmatpush2.msra.mxu0 0.0
            %1554 = vmatprep.subr.mxu0 0.0
            %1555 = vmatpush2.msra.mxu0 0.0
            %1556 = vmatprep.subr.mxu0 0.0
            %1557 = vmatpush2.msra.mxu0 0.0
            %1558 = vmatprep.subr.mxu0 0.0
            %1559 = vmatpush2.msra.mxu0 0.0
            %1560 = vmatprep.subr.mxu0 0.0
            %1561 = vmatpush2.msra.mxu0 0.0
            %1562 = vmatprep.subr.mxu0 0.0
            %1563 = vmatpush2.msra.mxu0 0.0
            %1564 = vmatprep.subr.mxu0 0.0
            %1565 = vmatpush2.msra.mxu0 0.0
            %1566 = vmatprep.subr.mxu0 0.0
            %1567 = vmatpush2.msra.mxu0 0.0
            %1568 = vmatprep.subr.mxu0 0.0
            %1569 = vmatpush2.msra.mxu0 0.0
            %1570 = vmatprep.subr.mxu0 0.0
            %1571 = vmatpush2.msra.mxu0 0.0
            %1572 = vmatprep.subr.mxu0 0.0
            %1573 = vmatpush2.msra.mxu0 0.0
            %1574 = vmatprep.mubr.f32.mxu0 0.0
            %1575 = vmatmul.mubr.f32.gmra.mxu0 %v1508
            %v1576 = vpop.f32.mrf.mxu0
            %v1577 = vadd.f32 0.0, %v1576
            %v1578 = vpop.f32.mrf.mxu0
            %1579 = vdwg.mxu0
            %v1580 = vmul.f32 %v1429, %v1577
            %v1582 = vlaneseq
            %v1583 = vshrl.u32 %v1582, 7
            %v1584 = vsub.s32 0, %v1583
            %v1585 = vrot.slane %v1280, %v1584
            %v1587 = vmul.f32 %v1580, %v1585
            %v1589 = vlaneseq
            %v1590 = vshrl.u32 %v1589, 7
            %v1591 = vsub.s32 0, %v1590
            %v1592 = vrot.slane %v1281, %v1591
            %v1594 = vadd.f32 %v1587, %v1592
            %v1595 = vmax.f32 %v1594, 0.0
            %1596 = vst.msk [vmem:[%s655] sm:$0xff] %vm855, %v1595
          $region96: #{tpu_custom_call.1} parent=83 // pred_fallthru
            _
        $region84: #{tpu_custom_call.1} parent=75 // pred_fallthru
          _
        %s1597 = sand.u32 %s415, 1
        %s1598 = scalar_lea.sflag [#allocation5], %s1597
        %s1599 = sand.u32 %s415, 1
        %s1600 = smul.addr %s1599, 8
        %s1601 = scalar_lea.vmem [#allocation4], %s1600
        // Predicated region
        $region97: #{tpu_custom_call.1} parent=75 // pred_check
          %p1602 = pneg %p425
        $region98: #{tpu_custom_call.1} parent=75 // pred_check_branch
          %1604 = sbr.rel (%p1602) target = $region100
        $region99: #{tpu_custom_call.1} parent=75 // pred_region
          %s1606 = ssub.s32 128, 128
          %1607 = vsyncadd %s1598, %s1606
          %s1608 = smul.addr %s33, 128
          %s1609 = scalar_lea.hbm %s14, %s1608
          %s1611 = sshll.u32 %s1601, 4
          %s1612 = int_to_ptr.vmem [resolvable:$true] %s1611
          %1614 = dma.vmem_to_hbm [thread:$0]  %s1612, 128, %s1609, %s1598
        $region100: #{tpu_custom_call.1} parent=75 // pred_fallthru
          _
      $region76: #{tpu_custom_call.1} parent=5 // pred_fallthru
        _
      %p1615 = scmp.le.s32.totalorder 2, %s23
      // Predicated region
      $region101: #{tpu_custom_call.1} parent=5 // pred_check
        %p1616 = pneg %p1615
      $region102: #{tpu_custom_call.1} parent=5 // pred_check_branch
        %1618 = sbr.rel (%p1616) target = $region104
      $region103: #{tpu_custom_call.1} parent=5 // pred_region
        %s1619 = ssub.s32 %s23, 2
        // Predicated region
        $region105: #{tpu_custom_call.1} parent=103 // pred_check
          %p1620 = pneg %p431
        $region106: #{tpu_custom_call.1} parent=103 // pred_check_branch
          %1622 = sbr.rel (%p1620) target = $region108
        $region107: #{tpu_custom_call.1} parent=103 // pred_region
          %s1623 = sand.u32 %s416, 1
          %s1624 = scalar_lea.sflag [#allocation5], %s1623
          %s1625 = sand.u32 %s416, 1
          %s1626 = smul.addr %s1625, 8
          %s1627 = scalar_lea.vmem [#allocation4], %s1626
          %1628 = dma.done %s1624, 128
        $region108: #{tpu_custom_call.1} parent=103 // pred_fallthru
          _
      $region104: #{tpu_custom_call.1} parent=5 // pred_fallthru
        _
    $region6: #{tpu_custom_call.1} parent=1 // loop_footer
      %s27 = sadd.s32 1, %s23
    $region7: #{tpu_custom_call.1} parent=1 // loop_footer_branch
      %22 = sbr.rel target = $region3
    $region8: #{tpu_custom_call.1} parent=1 // loop_exit
      _
    %1629 = vsyncpa [#allocation5], 1
    %s1630 = scalar_lea.sflag [#allocation5], 1
    %1631 = vsyncpa %s1630, 1

</llo_original>
